<compile_context>
chip_gen: v7x
topology: tpu7x:2x2x1
jax: 0.10.0
libtpu: 0.0.40
codegen_flags: <defaults>
</compile_context>

<pallas_src>
import functools

import jax
import jax.numpy as jnp
from jax import lax
from jax.experimental import pallas as pl
from jax.experimental.pallas import tpu as pltpu

F32 = jnp.float32
BF16 = jnp.bfloat16


# ---------------------------------------------------------------------------
# Tiling helpers
# ---------------------------------------------------------------------------

def _largest_divisor_leq(n, cap):
    best = 1
    for d in range(1, n + 1):
        if n % d == 0 and d <= cap:
            best = d
    return best


def _choose_block_rows(n_batch, ho, wo, c, bytes_per_out_pix):
    """Pick TH (output rows per grid step), a divisor of ho.

    Targets a large M = TH*Wo while keeping the per-step working set (incl.
    double buffering) inside a conservative VMEM budget, and keeps >= 2 blocks
    along the parallel grid axes so v7x's two TensorCores both get work.
    """
    budget = 12 * 1024 * 1024                       # per-step working-set budget
    max_m = min(4096, budget // max(1, bytes_per_out_pix * c))
    cap = max(1, max_m // max(1, wo))
    th = _largest_divisor_leq(ho, cap)
    if n_batch * (ho // th) < 2 and th > 1:         # keep >=2 parallel blocks
        th = _largest_divisor_leq(ho, max(1, th // 2))
    return th


# ---------------------------------------------------------------------------
# with_conv=True : 3x3 / stride-2 conv on the (0,1,0,1)-padded input
# ---------------------------------------------------------------------------

def _conv_block_kernel(ee_m, ee_h, eo_m, eo_h, oe_m, oo_m, w_ref, b_ref, o_ref,
                       ee2, eo2, *, th, wo):
    """One (TH, Wo, Cout) output block per grid step.

    ee_m/eo_m : (TH, Wo+1, C) / (TH, Wo, C)   even input rows 2t   (ki=0)
    oe_m/oo_m : (TH, Wo+1, C) / (TH, Wo, C)   odd  input rows 2t+1 (ki=1)
    ee_h/eo_h : (1, Wo+1, C) / (1, Wo, C)     bottom halo even row (ki=2 of last t)
    w_ref     : (3, 3, Cin, Cout)  VMEM-resident weights
    b_ref     : (1, Cout) f32 bias
    ee2/eo2   : VMEM scratch for the ki=2 row operands (evens shifted by one
                output row + halo) -- assembled with leading-dim copies only.
    """
    cin, cout = w_ref.shape[2], w_ref.shape[3]
    m = th * wo

    if th > 1:
        ee2[0:th - 1] = ee_m[1:th]
        eo2[0:th - 1] = eo_m[1:th]
    ee2[th - 1:th] = ee_h[...]
    eo2[th - 1:th] = eo_h[...]

    def col_taps(e_rows, o_rows):
        # e_rows: (th, wo+1, C) even-column phase; o_rows: (th, wo, C) odd-column.
        a0 = e_rows[:, 0:wo, :].reshape(m, cin)         # kj=0 -> col 2w
        a1 = o_rows.reshape(m, cin)                     # kj=1 -> col 2w+1
        a2 = e_rows[:, 1:wo + 1, :].reshape(m, cin)     # kj=2 -> col 2w+2
        return (a0, a1, a2)

    row_phases = (
        (ee_m[...], eo_m[...]),   # ki = 0 : input rows 2t
        (oe_m[...], oo_m[...]),   # ki = 1 : input rows 2t+1
        (ee2[...], eo2[...]),     # ki = 2 : input rows 2t+2 (shifted evens + halo)
    )

    acc = None
    for ki, (e_rows, o_rows) in enumerate(row_phases):
        for kj, a in enumerate(col_taps(e_rows, o_rows)):
            d = jnp.dot(a, w_ref[ki, kj], preferred_element_type=jnp.float32)
            acc = d if acc is None else acc + d

    out = acc + b_ref[...]                               # (M, Cout) + (1, Cout)
    o_ref[...] = out.reshape(th, wo, cout).astype(o_ref.dtype)


def downsample_conv(x_nhwc, w, b, *, out_dtype=None, compute_dtype=BF16):
    """x_nhwc: (N,H,W,C); w: (Cout,Cin,3,3) torch layout; b: (Cout,)."""
    N, H, W, C = x_nhwc.shape
    assert H % 2 == 0 and W % 2 == 0, "even spatial dims expected"
    # TODO(synk): odd H/W (which the torch asymmetric pad supports) is not handled.
    Cout, Cin, KH, KW = w.shape
    assert (Cin, KH, KW) == (C, 3, 3)
    Ho, Wo = H // 2, W // 2
    out_dtype = out_dtype or x_nhwc.dtype

    # Single fused pad + cast + parity-phase split.  The 4 phases are disjoint
    # quarters of the padded input -> ~1 read of x, ~1 write (in bf16).
    xp = jnp.pad(x_nhwc, ((0, 0), (0, 1), (0, 1), (0, 0))).astype(compute_dtype)
    ee = xp[:, 0::2, 0::2, :]    # (N, Ho+1, Wo+1, C): rows 2t,   cols 2w
    eo = xp[:, 0::2, 1::2, :]    # (N, Ho+1, Wo,   C): rows 2t,   cols 2w+1
    oe = xp[:, 1::2, 0::2, :]    # (N, Ho,   Wo+1, C): rows 2t+1, cols 2w
    oo = xp[:, 1::2, 1::2, :]    # (N, Ho,   Wo,   C): rows 2t+1, cols 2w+1
    wk = jnp.transpose(w, (2, 3, 1, 0)).astype(compute_dtype)   # (3,3,Cin,Cout)
    bias = b.reshape(1, Cout).astype(F32)

    TH = _choose_block_rows(N, Ho, Wo, C, bytes_per_out_pix=32)
    HB = Ho // TH

    def im_main(n, hb):
        return (n, hb, 0, 0)

    def im_halo(n, hb):
        # One even row directly below the block (row (hb+1)*TH of the even phase;
        # block size 1 along that dim, so this is an element index).
        return (n, (hb + 1) * TH, 0, 0)

    kernel = functools.partial(_conv_block_kernel, th=TH, wo=Wo)
    out = pl.pallas_call(
        kernel,
        grid=(N, HB),
        in_specs=[
            pl.BlockSpec((None, TH, Wo + 1, C), im_main),   # ee main
            pl.BlockSpec((None, 1, Wo + 1, C), im_halo),    # ee bottom-halo row
            pl.BlockSpec((None, TH, Wo, C), im_main),       # eo main
            pl.BlockSpec((None, 1, Wo, C), im_halo),        # eo bottom-halo row
            pl.BlockSpec((None, TH, Wo + 1, C), im_main),   # oe
            pl.BlockSpec((None, TH, Wo, C), im_main),       # oo
            pl.BlockSpec((3, 3, C, Cout), lambda n, hb: (0, 0, 0, 0)),  # weights
            pl.BlockSpec((1, Cout), lambda n, hb: (0, 0)),              # bias
        ],
        out_specs=pl.BlockSpec((None, TH, Wo, Cout), im_main),
        out_shape=jax.ShapeDtypeStruct((N, Ho, Wo, Cout), out_dtype),
        scratch_shapes=[
            pltpu.VMEM((TH, Wo + 1, C), compute_dtype),     # ki=2 even-col rows
            pltpu.VMEM((TH, Wo, C), compute_dtype),         # ki=2 odd-col rows
        ],
        compiler_params=pltpu.CompilerParams(
            dimension_semantics=("parallel", "parallel"),
            vmem_limit_bytes=48 * 1024 * 1024),
    )(ee, ee, eo, eo, oe, oo, wk, bias)
    return out


# ---------------------------------------------------------------------------
# with_conv=False : 2x2 / stride-2 average pooling
# ---------------------------------------------------------------------------

def _avgpool_kernel(x_ref, o_ref):
    # x_ref: (TH, 2, Wo, 2*C) -- row pair on a leading dim, column pair folded
    # into the lane dim (metadata-only reshape in the wrapper).  o_ref: (TH, Wo, C).
    c = o_ref.shape[-1]
    x = x_ref[...].astype(jnp.float32)
    s = x[:, 0] + x[:, 1]                         # sum the two input rows
    o_ref[...] = (0.25 * (s[..., :c] + s[..., c:])).astype(o_ref.dtype)


def downsample_avgpool(x_nhwc):
    N, H, W, C = x_nhwc.shape
    assert H % 2 == 0 and W % 2 == 0, "even spatial dims expected"
    # TODO(synk): odd H/W (torch avg_pool2d floor-drops the last row/col) not handled.
    Ho, Wo = H // 2, W // 2
    # Free reshape: (N, H, W, C) -> (N, Ho, 2, Wo, 2C); no extra HBM pass.
    xr = x_nhwc.reshape(N, Ho, 2, Wo, 2 * C)

    TH = _choose_block_rows(N, Ho, Wo, C, bytes_per_out_pix=40)
    HB = Ho // TH
    return pl.pallas_call(
        _avgpool_kernel,
        grid=(N, HB),
        in_specs=[pl.BlockSpec((None, TH, 2, Wo, 2 * C),
                               lambda n, hb: (n, hb, 0, 0, 0))],
        out_specs=pl.BlockSpec((None, TH, Wo, C), lambda n, hb: (n, hb, 0, 0)),
        out_shape=jax.ShapeDtypeStruct((N, Ho, Wo, C), x_nhwc.dtype),
        compiler_params=pltpu.CompilerParams(
            dimension_semantics=("parallel", "parallel"),
            vmem_limit_bytes=48 * 1024 * 1024),
    )(xr)


# ---------------------------------------------------------------------------
# Public forward (PyTorch NCHW convention at the boundary)
# ---------------------------------------------------------------------------

def downsample_forward(params, x_nchw, *, with_conv):
    # NCHW at the API boundary to match PyTorch; kernels are NHWC internally.
    # (Keeping the surrounding model NHWC end-to-end removes both transposes.)
    x = jnp.transpose(x_nchw, (0, 2, 3, 1))
    if with_conv:
        y = downsample_conv(x, params["conv_w"], params["conv_b"])
    else:
        y = downsample_avgpool(x)
    return jnp.transpose(y, (0, 3, 1, 2))


# ---------------------------------------------------------------------------

if __name__ == "__main__":
    key = jax.random.PRNGKey(0)
    kx, kw, kb = jax.random.split(key, 3)

    # Small, module-consistent shapes: batch=2, channels=128 (lane-dense, the
    # smallest real VQGAN width), spatial 16 -> output spatial 8.
    N, C, H, W = 2, 128, 16, 16
    x = jax.random.normal(kx, (N, C, H, W), F32)
    w = jax.random.normal(kw, (C, C, 3, 3), F32) * (2.0 / (9 * C)) ** 0.5
    b = 0.01 * jax.random.normal(kb, (C,), F32)
    params = {"conv_w": w, "conv_b": b}

    fwd_conv = jax.jit(functools.partial(downsample_forward, with_conv=True))
    fwd_pool = jax.jit(functools.partial(downsample_forward, with_conv=False))

    y_conv = fwd_conv(params, x)
    y_pool = fwd_pool(params, x)
    jax.block_until_ready((y_conv, y_pool))

    # Pure-XLA references (bf16 MXU operands -> generous conv tolerance).
    x_nhwc = jnp.transpose(x, (0, 2, 3, 1))
    ref_conv = lax.conv_general_dilated(
        x_nhwc, jnp.transpose(w, (2, 3, 1, 0)),
        window_strides=(2, 2), padding=((0, 1), (0, 1)),
        dimension_numbers=("NHWC", "HWIO", "NHWC")) + b.reshape(1, 1, 1, C)
    ref_conv = jnp.transpose(ref_conv, (0, 3, 1, 2))
    ref_pool = jnp.transpose(
        jnp.mean(x_nhwc.reshape(N, H // 2, 2, W // 2, 2, C), axis=(2, 4)),
        (0, 3, 1, 2))

    err_conv = float(jnp.max(jnp.abs(y_conv - ref_conv)))
    err_pool = float(jnp.max(jnp.abs(y_pool - ref_pool)))
    assert err_conv < 5e-2, f"conv mismatch: {err_conv}"
    assert err_pool < 1e-5, f"avgpool mismatch: {err_pool}"

    print("KERNEL_OK")
</pallas_src>

<mosaic_0001>
module attributes {stable_mosaic.version = 11 : i64} {
  func.func @_conv_block_kernel(%arg0: i32, %arg1: i32, %arg2: memref<1x8x9x128xbf16, #tpu.memory_space<vmem>>, %arg3: memref<1x1x9x128xbf16, #tpu.memory_space<vmem>>, %arg4: memref<1x8x8x128xbf16, #tpu.memory_space<vmem>>, %arg5: memref<1x1x8x128xbf16, #tpu.memory_space<vmem>>, %arg6: memref<1x8x9x128xbf16, #tpu.memory_space<vmem>>, %arg7: memref<1x8x8x128xbf16, #tpu.memory_space<vmem>>, %arg8: memref<3x3x128x128xbf16, #tpu.memory_space<vmem>>, %arg9: memref<1x128xf32, #tpu.memory_space<vmem>>, %arg10: memref<1x8x8x128xf32, #tpu.memory_space<vmem>>, %arg11: memref<8x9x128xbf16, #tpu.memory_space<vmem>>, %arg12: memref<8x8x128xbf16, #tpu.memory_space<vmem>>) attributes {dimension_semantics = [#tpu.dimension_semantics<parallel>, #tpu.dimension_semantics<parallel>], iteration_bounds = array<i64: 2, 1>, scalar_prefetch = 0 : i64, scratch_operands = 2 : i64, tpu.core_type = #tpu.core_type<tc>, window_params = [{transform_indices = @transform_0, window_bounds = array<i64: 1, 8, 9, 128>}, {transform_indices = @transform_1, window_bounds = array<i64: 1, 1, 9, 128>}, {transform_indices = @transform_2, window_bounds = array<i64: 1, 8, 8, 128>}, {transform_indices = @transform_3, window_bounds = array<i64: 1, 1, 8, 128>}, {transform_indices = @transform_4, window_bounds = array<i64: 1, 8, 9, 128>}, {transform_indices = @transform_5, window_bounds = array<i64: 1, 8, 8, 128>}, {pipeline_mode = #tpu.pipeline_mode<synchronous>, transform_indices = @transform_6, window_bounds = array<i64: 3, 3, 128, 128>}, {pipeline_mode = #tpu.pipeline_mode<synchronous>, transform_indices = @transform_7, window_bounds = array<i64: 1, 128>}, {transform_indices = @transform_8, window_bounds = array<i64: 1, 8, 8, 128>}]} {
    %c0 = arith.constant 0 : index
    %c1 = arith.constant 1 : index
    %c0_0 = arith.constant 0 : index
    %c0_1 = arith.constant 0 : index
    %0 = vector.load %arg2[%c0, %c1, %c0_0, %c0_1] : memref<1x8x9x128xbf16, #tpu.memory_space<vmem>>, vector<1x7x9x128xbf16>
    %1 = vector.shape_cast %0 : vector<1x7x9x128xbf16> to vector<7x9x128xbf16>
    %c0_2 = arith.constant 0 : index
    %c0_3 = arith.constant 0 : index
    %c0_4 = arith.constant 0 : index
    %2 = vector.load %arg11[%c0_2, %c0_3, %c0_4] : memref<8x9x128xbf16, #tpu.memory_space<vmem>>, vector<7x9x128xbf16>
    tpu.vector_store %arg11[%c0_2, %c0_3, %c0_4], %1 {strides = array<i32>} : memref<8x9x128xbf16, #tpu.memory_space<vmem>>, vector<7x9x128xbf16>,
    %c0_5 = arith.constant 0 : index
    %c1_6 = arith.constant 1 : index
    %c0_7 = arith.constant 0 : index
    %c0_8 = arith.constant 0 : index
    %3 = vector.load %arg4[%c0_5, %c1_6, %c0_7, %c0_8] : memref<1x8x8x128xbf16, #tpu.memory_space<vmem>>, vector<1x7x8x128xbf16>
    %4 = vector.shape_cast %3 : vector<1x7x8x128xbf16> to vector<7x8x128xbf16>
    %c0_9 = arith.constant 0 : index
    %c0_10 = arith.constant 0 : index
    %c0_11 = arith.constant 0 : index
    %5 = vector.load %arg12[%c0_9, %c0_10, %c0_11] : memref<8x8x128xbf16, #tpu.memory_space<vmem>>, vector<7x8x128xbf16>
    tpu.vector_store %arg12[%c0_9, %c0_10, %c0_11], %4 {strides = array<i32>} : memref<8x8x128xbf16, #tpu.memory_space<vmem>>, vector<7x8x128xbf16>,
    %c0_12 = arith.constant 0 : index
    %c0_13 = arith.constant 0 : index
    %c0_14 = arith.constant 0 : index
    %c0_15 = arith.constant 0 : index
    %6 = vector.load %arg3[%c0_12, %c0_13, %c0_14, %c0_15] : memref<1x1x9x128xbf16, #tpu.memory_space<vmem>>, vector<1x1x9x128xbf16>
    %7 = vector.shape_cast %6 : vector<1x1x9x128xbf16> to vector<1x9x128xbf16>
    %c7 = arith.constant 7 : index
    %c0_16 = arith.constant 0 : index
    %c0_17 = arith.constant 0 : index
    %8 = vector.load %arg11[%c7, %c0_16, %c0_17] : memref<8x9x128xbf16, #tpu.memory_space<vmem>>, vector<1x9x128xbf16>
    tpu.vector_store %arg11[%c7, %c0_16, %c0_17], %7 {strides = array<i32>} : memref<8x9x128xbf16, #tpu.memory_space<vmem>>, vector<1x9x128xbf16>,
    %c0_18 = arith.constant 0 : index
    %c0_19 = arith.constant 0 : index
    %c0_20 = arith.constant 0 : index
    %c0_21 = arith.constant 0 : index
    %9 = vector.load %arg5[%c0_18, %c0_19, %c0_20, %c0_21] : memref<1x1x8x128xbf16, #tpu.memory_space<vmem>>, vector<1x1x8x128xbf16>
    %10 = vector.shape_cast %9 : vector<1x1x8x128xbf16> to vector<1x8x128xbf16>
    %c7_22 = arith.constant 7 : index
    %c0_23 = arith.constant 0 : index
    %c0_24 = arith.constant 0 : index
    %11 = vector.load %arg12[%c7_22, %c0_23, %c0_24] : memref<8x8x128xbf16, #tpu.memory_space<vmem>>, vector<1x8x128xbf16>
    tpu.vector_store %arg12[%c7_22, %c0_23, %c0_24], %10 {strides = array<i32>} : memref<8x8x128xbf16, #tpu.memory_space<vmem>>, vector<1x8x128xbf16>,
    %c0_25 = arith.constant 0 : index
    %c0_26 = arith.constant 0 : index
    %c0_27 = arith.constant 0 : index
    %c0_28 = arith.constant 0 : index
    %12 = vector.load %arg2[%c0_25, %c0_26, %c0_27, %c0_28] : memref<1x8x9x128xbf16, #tpu.memory_space<vmem>>, vector<1x8x9x128xbf16>
    %13 = vector.shape_cast %12 : vector<1x8x9x128xbf16> to vector<8x9x128xbf16>
    %c0_29 = arith.constant 0 : index
    %c0_30 = arith.constant 0 : index
    %c0_31 = arith.constant 0 : index
    %c0_32 = arith.constant 0 : index
    %14 = vector.load %arg4[%c0_29, %c0_30, %c0_31, %c0_32] : memref<1x8x8x128xbf16, #tpu.memory_space<vmem>>, vector<1x8x8x128xbf16>
    %15 = vector.shape_cast %14 : vector<1x8x8x128xbf16> to vector<8x8x128xbf16>
    %c0_33 = arith.constant 0 : index
    %c0_34 = arith.constant 0 : index
    %c0_35 = arith.constant 0 : index
    %c0_36 = arith.constant 0 : index
    %16 = vector.load %arg6[%c0_33, %c0_34, %c0_35, %c0_36] : memref<1x8x9x128xbf16, #tpu.memory_space<vmem>>, vector<1x8x9x128xbf16>
    %17 = vector.shape_cast %16 : vector<1x8x9x128xbf16> to vector<8x9x128xbf16>
    %c0_37 = arith.constant 0 : index
    %c0_38 = arith.constant 0 : index
    %c0_39 = arith.constant 0 : index
    %c0_40 = arith.constant 0 : index
    %18 = vector.load %arg7[%c0_37, %c0_38, %c0_39, %c0_40] : memref<1x8x8x128xbf16, #tpu.memory_space<vmem>>, vector<1x8x8x128xbf16>
    %19 = vector.shape_cast %18 : vector<1x8x8x128xbf16> to vector<8x8x128xbf16>
    %c0_41 = arith.constant 0 : index
    %c0_42 = arith.constant 0 : index
    %c0_43 = arith.constant 0 : index
    %20 = vector.load %arg11[%c0_41, %c0_42, %c0_43] : memref<8x9x128xbf16, #tpu.memory_space<vmem>>, vector<8x9x128xbf16>
    %c0_44 = arith.constant 0 : index
    %c0_45 = arith.constant 0 : index
    %c0_46 = arith.constant 0 : index
    %21 = vector.load %arg12[%c0_44, %c0_45, %c0_46] : memref<8x8x128xbf16, #tpu.memory_space<vmem>>, vector<8x8x128xbf16>
    %22 = vector.extract_strided_slice %13 {offsets = [0, 0, 0], sizes = [8, 8, 128], strides = [1, 1, 1]} : vector<8x9x128xbf16> to vector<8x8x128xbf16>
    %23 = vector.shape_cast %22 : vector<8x8x128xbf16> to vector<64x128xbf16>
    %24 = vector.shape_cast %15 : vector<8x8x128xbf16> to vector<64x128xbf16>
    %25 = vector.extract_strided_slice %13 {offsets = [0, 1, 0], sizes = [8, 8, 128], strides = [1, 1, 1]} : vector<8x9x128xbf16> to vector<8x8x128xbf16>
    %26 = vector.shape_cast %25 : vector<8x8x128xbf16> to vector<64x128xbf16>
    %c0_47 = arith.constant 0 : index
    %c0_48 = arith.constant 0 : index
    %c0_49 = arith.constant 0 : index
    %c0_50 = arith.constant 0 : index
    %27 = vector.load %arg8[%c0_47, %c0_48, %c0_49, %c0_50] : memref<3x3x128x128xbf16, #tpu.memory_space<vmem>>, vector<1x1x128x128xbf16>
    %28 = vector.shape_cast %27 : vector<1x1x128x128xbf16> to vector<128x128xbf16>
    %cst = arith.constant dense<0.000000e+00> : vector<64x128xf32>
    %29 = tpu.matmul %23, %28, %cst {dimension_numbers = #tpu.dot_dimension_numbers<[1], [0], [0], [1], [0, 0, 1, 1], [], []>} : vector<64x128xbf16>, vector<128x128xbf16>, vector<64x128xf32> -> vector<64x128xf32>
    %c0_51 = arith.constant 0 : index
    %c1_52 = arith.constant 1 : index
    %c0_53 = arith.constant 0 : index
    %c0_54 = arith.constant 0 : index
    %30 = vector.load %arg8[%c0_51, %c1_52, %c0_53, %c0_54] : memref<3x3x128x128xbf16, #tpu.memory_space<vmem>>, vector<1x1x128x128xbf16>
    %31 = vector.shape_cast %30 : vector<1x1x128x128xbf16> to vector<128x128xbf16>
    %cst_55 = arith.constant dense<0.000000e+00> : vector<64x128xf32>
    %32 = tpu.matmul %24, %31, %cst_55 {dimension_numbers = #tpu.dot_dimension_numbers<[1], [0], [0], [1], [0, 0, 1, 1], [], []>} : vector<64x128xbf16>, vector<128x128xbf16>, vector<64x128xf32> -> vector<64x128xf32>
    %33 = arith.addf %29, %32 : vector<64x128xf32>
    %c0_56 = arith.constant 0 : index
    %c2 = arith.constant 2 : index
    %c0_57 = arith.constant 0 : index
    %c0_58 = arith.constant 0 : index
    %34 = vector.load %arg8[%c0_56, %c2, %c0_57, %c0_58] : memref<3x3x128x128xbf16, #tpu.memory_space<vmem>>, vector<1x1x128x128xbf16>
    %35 = vector.shape_cast %34 : vector<1x1x128x128xbf16> to vector<128x128xbf16>
    %cst_59 = arith.constant dense<0.000000e+00> : vector<64x128xf32>
    %36 = tpu.matmul %26, %35, %cst_59 {dimension_numbers = #tpu.dot_dimension_numbers<[1], [0], [0], [1], [0, 0, 1, 1], [], []>} : vector<64x128xbf16>, vector<128x128xbf16>, vector<64x128xf32> -> vector<64x128xf32>
    %37 = arith.addf %33, %36 : vector<64x128xf32>
    %38 = vector.extract_strided_slice %17 {offsets = [0, 0, 0], sizes = [8, 8, 128], strides = [1, 1, 1]} : vector<8x9x128xbf16> to vector<8x8x128xbf16>
    %39 = vector.shape_cast %38 : vector<8x8x128xbf16> to vector<64x128xbf16>
    %40 = vector.shape_cast %19 : vector<8x8x128xbf16> to vector<64x128xbf16>
    %41 = vector.extract_strided_slice %17 {offsets = [0, 1, 0], sizes = [8, 8, 128], strides = [1, 1, 1]} : vector<8x9x128xbf16> to vector<8x8x128xbf16>
    %42 = vector.shape_cast %41 : vector<8x8x128xbf16> to vector<64x128xbf16>
    %c1_60 = arith.constant 1 : index
    %c0_61 = arith.constant 0 : index
    %c0_62 = arith.constant 0 : index
    %c0_63 = arith.constant 0 : index
    %43 = vector.load %arg8[%c1_60, %c0_61, %c0_62, %c0_63] : memref<3x3x128x128xbf16, #tpu.memory_space<vmem>>, vector<1x1x128x128xbf16>
    %44 = vector.shape_cast %43 : vector<1x1x128x128xbf16> to vector<128x128xbf16>
    %cst_64 = arith.constant dense<0.000000e+00> : vector<64x128xf32>
    %45 = tpu.matmul %39, %44, %cst_64 {dimension_numbers = #tpu.dot_dimension_numbers<[1], [0], [0], [1], [0, 0, 1, 1], [], []>} : vector<64x128xbf16>, vector<128x128xbf16>, vector<64x128xf32> -> vector<64x128xf32>
    %46 = arith.addf %37, %45 : vector<64x128xf32>
    %c1_65 = arith.constant 1 : index
    %c1_66 = arith.constant 1 : index
    %c0_67 = arith.constant 0 : index
    %c0_68 = arith.constant 0 : index
    %47 = vector.load %arg8[%c1_65, %c1_66, %c0_67, %c0_68] : memref<3x3x128x128xbf16, #tpu.memory_space<vmem>>, vector<1x1x128x128xbf16>
    %48 = vector.shape_cast %47 : vector<1x1x128x128xbf16> to vector<128x128xbf16>
    %cst_69 = arith.constant dense<0.000000e+00> : vector<64x128xf32>
    %49 = tpu.matmul %40, %48, %cst_69 {dimension_numbers = #tpu.dot_dimension_numbers<[1], [0], [0], [1], [0, 0, 1, 1], [], []>} : vector<64x128xbf16>, vector<128x128xbf16>, vector<64x128xf32> -> vector<64x128xf32>
    %50 = arith.addf %46, %49 : vector<64x128xf32>
    %c1_70 = arith.constant 1 : index
    %c2_71 = arith.constant 2 : index
    %c0_72 = arith.constant 0 : index
    %c0_73 = arith.constant 0 : index
    %51 = vector.load %arg8[%c1_70, %c2_71, %c0_72, %c0_73] : memref<3x3x128x128xbf16, #tpu.memory_space<vmem>>, vector<1x1x128x128xbf16>
    %52 = vector.shape_cast %51 : vector<1x1x128x128xbf16> to vector<128x128xbf16>
    %cst_74 = arith.constant dense<0.000000e+00> : vector<64x128xf32>
    %53 = tpu.matmul %42, %52, %cst_74 {dimension_numbers = #tpu.dot_dimension_numbers<[1], [0], [0], [1], [0, 0, 1, 1], [], []>} : vector<64x128xbf16>, vector<128x128xbf16>, vector<64x128xf32> -> vector<64x128xf32>
    %54 = arith.addf %50, %53 : vector<64x128xf32>
    %55 = vector.extract_strided_slice %20 {offsets = [0, 0, 0], sizes = [8, 8, 128], strides = [1, 1, 1]} : vector<8x9x128xbf16> to vector<8x8x128xbf16>
    %56 = vector.shape_cast %55 : vector<8x8x128xbf16> to vector<64x128xbf16>
    %57 = vector.shape_cast %21 : vector<8x8x128xbf16> to vector<64x128xbf16>
    %58 = vector.extract_strided_slice %20 {offsets = [0, 1, 0], sizes = [8, 8, 128], strides = [1, 1, 1]} : vector<8x9x128xbf16> to vector<8x8x128xbf16>
    %59 = vector.shape_cast %58 : vector<8x8x128xbf16> to vector<64x128xbf16>
    %c2_75 = arith.constant 2 : index
    %c0_76 = arith.constant 0 : index
    %c0_77 = arith.constant 0 : index
    %c0_78 = arith.constant 0 : index
    %60 = vector.load %arg8[%c2_75, %c0_76, %c0_77, %c0_78] : memref<3x3x128x128xbf16, #tpu.memory_space<vmem>>, vector<1x1x128x128xbf16>
    %61 = vector.shape_cast %60 : vector<1x1x128x128xbf16> to vector<128x128xbf16>
    %cst_79 = arith.constant dense<0.000000e+00> : vector<64x128xf32>
    %62 = tpu.matmul %56, %61, %cst_79 {dimension_numbers = #tpu.dot_dimension_numbers<[1], [0], [0], [1], [0, 0, 1, 1], [], []>} : vector<64x128xbf16>, vector<128x128xbf16>, vector<64x128xf32> -> vector<64x128xf32>
    %63 = arith.addf %54, %62 : vector<64x128xf32>
    %c2_80 = arith.constant 2 : index
    %c1_81 = arith.constant 1 : index
    %c0_82 = arith.constant 0 : index
    %c0_83 = arith.constant 0 : index
    %64 = vector.load %arg8[%c2_80, %c1_81, %c0_82, %c0_83] : memref<3x3x128x128xbf16, #tpu.memory_space<vmem>>, vector<1x1x128x128xbf16>
    %65 = vector.shape_cast %64 : vector<1x1x128x128xbf16> to vector<128x128xbf16>
    %cst_84 = arith.constant dense<0.000000e+00> : vector<64x128xf32>
    %66 = tpu.matmul %57, %65, %cst_84 {dimension_numbers = #tpu.dot_dimension_numbers<[1], [0], [0], [1], [0, 0, 1, 1], [], []>} : vector<64x128xbf16>, vector<128x128xbf16>, vector<64x128xf32> -> vector<64x128xf32>
    %67 = arith.addf %63, %66 : vector<64x128xf32>
    %c2_85 = arith.constant 2 : index
    %c2_86 = arith.constant 2 : index
    %c0_87 = arith.constant 0 : index
    %c0_88 = arith.constant 0 : index
    %68 = vector.load %arg8[%c2_85, %c2_86, %c0_87, %c0_88] : memref<3x3x128x128xbf16, #tpu.memory_space<vmem>>, vector<1x1x128x128xbf16>
    %69 = vector.shape_cast %68 : vector<1x1x128x128xbf16> to vector<128x128xbf16>
    %cst_89 = arith.constant dense<0.000000e+00> : vector<64x128xf32>
    %70 = tpu.matmul %59, %69, %cst_89 {dimension_numbers = #tpu.dot_dimension_numbers<[1], [0], [0], [1], [0, 0, 1, 1], [], []>} : vector<64x128xbf16>, vector<128x128xbf16>, vector<64x128xf32> -> vector<64x128xf32>
    %71 = arith.addf %67, %70 : vector<64x128xf32>
    %c0_90 = arith.constant 0 : index
    %c0_91 = arith.constant 0 : index
    %72 = vector.load %arg9[%c0_90, %c0_91] : memref<1x128xf32, #tpu.memory_space<vmem>>, vector<1x128xf32>
    %73 = vector.broadcast %72 : vector<1x128xf32> to vector<64x128xf32>
    %74 = arith.addf %71, %73 : vector<64x128xf32>
    %75 = vector.shape_cast %74 : vector<64x128xf32> to vector<8x8x128xf32>
    %c0_92 = arith.constant 0 : index
    %c0_93 = arith.constant 0 : index
    %c0_94 = arith.constant 0 : index
    %c0_95 = arith.constant 0 : index
    %76 = vector.load %arg10[%c0_92, %c0_93, %c0_94, %c0_95] : memref<1x8x8x128xf32, #tpu.memory_space<vmem>>, vector<1x8x8x128xf32>
    %77 = vector.shape_cast %76 : vector<1x8x8x128xf32> to vector<8x8x128xf32>
    %78 = vector.shape_cast %75 : vector<8x8x128xf32> to vector<1x8x8x128xf32>
    tpu.vector_store %arg10[%c0_92, %c0_93, %c0_94, %c0_95], %78 {strides = array<i32>} : memref<1x8x8x128xf32, #tpu.memory_space<vmem>>, vector<1x8x8x128xf32>,
    return
  }
  func.func @transform_0(%arg0: i32, %arg1: i32) -> (i32, i32, i32, i32) {
    %c0_i32 = arith.constant 0 : i32
    %c0_i32_0 = arith.constant 0 : i32
    %c0_i32_1 = arith.constant 0 : i32
    return %arg0, %arg1, %c0_i32, %c0_i32_0 : i32, i32, i32, i32
  }
  func.func @transform_1(%arg0: i32, %arg1: i32) -> (i32, i32, i32, i32) {
    %c1_i32 = arith.constant 1 : i32
    %0 = arith.addi %arg1, %c1_i32 : i32
    %c8_i32 = arith.constant 8 : i32
    %1 = arith.muli %0, %c8_i32 : i32
    %c0_i32 = arith.constant 0 : i32
    %c0_i32_0 = arith.constant 0 : i32
    %c0_i32_1 = arith.constant 0 : i32
    return %arg0, %1, %c0_i32, %c0_i32_0 : i32, i32, i32, i32
  }
  func.func @transform_2(%arg0: i32, %arg1: i32) -> (i32, i32, i32, i32) {
    %c0_i32 = arith.constant 0 : i32
    %c0_i32_0 = arith.constant 0 : i32
    %c0_i32_1 = arith.constant 0 : i32
    return %arg0, %arg1, %c0_i32, %c0_i32_0 : i32, i32, i32, i32
  }
  func.func @transform_3(%arg0: i32, %arg1: i32) -> (i32, i32, i32, i32) {
    %c1_i32 = arith.constant 1 : i32
    %0 = arith.addi %arg1, %c1_i32 : i32
    %c8_i32 = arith.constant 8 : i32
    %1 = arith.muli %0, %c8_i32 : i32
    %c0_i32 = arith.constant 0 : i32
    %c0_i32_0 = arith.constant 0 : i32
    %c0_i32_1 = arith.constant 0 : i32
    return %arg0, %1, %c0_i32, %c0_i32_0 : i32, i32, i32, i32
  }
  func.func @transform_4(%arg0: i32, %arg1: i32) -> (i32, i32, i32, i32) {
    %c0_i32 = arith.constant 0 : i32
    %c0_i32_0 = arith.constant 0 : i32
    %c0_i32_1 = arith.constant 0 : i32
    return %arg0, %arg1, %c0_i32, %c0_i32_0 : i32, i32, i32, i32
  }
  func.func @transform_5(%arg0: i32, %arg1: i32) -> (i32, i32, i32, i32) {
    %c0_i32 = arith.constant 0 : i32
    %c0_i32_0 = arith.constant 0 : i32
    %c0_i32_1 = arith.constant 0 : i32
    return %arg0, %arg1, %c0_i32, %c0_i32_0 : i32, i32, i32, i32
  }
  func.func @transform_6(%arg0: i32, %arg1: i32) -> (i32, i32, i32, i32) {
    %c0_i32 = arith.constant 0 : i32
    %c0_i32_0 = arith.constant 0 : i32
    %c0_i32_1 = arith.constant 0 : i32
    %c0_i32_2 = arith.constant 0 : i32
    %c0_i32_3 = arith.constant 0 : i32
    return %c0_i32, %c0_i32_0, %c0_i32_1, %c0_i32_2 : i32, i32, i32, i32
  }
  func.func @transform_7(%arg0: i32, %arg1: i32) -> (i32, i32) {
    %c0_i32 = arith.constant 0 : i32
    %c0_i32_0 = arith.constant 0 : i32
    %c0_i32_1 = arith.constant 0 : i32
    return %c0_i32, %c0_i32_0 : i32, i32
  }
  func.func @transform_8(%arg0: i32, %arg1: i32) -> (i32, i32, i32, i32) {
    %c0_i32 = arith.constant 0 : i32
    %c0_i32_0 = arith.constant 0 : i32
    %c0_i32_1 = arith.constant 0 : i32
    return %arg0, %arg1, %c0_i32, %c0_i32_0 : i32, i32, i32, i32
  }
}

</mosaic_0001>

<llo_original>
// kernel: downsample_forward.1
$region0: #{downsample_forward.1}
  #allocation0 [shape = 'u32[]', space=smem, size = 0x4, offset = 0x4, fixed_abs, tag = 'smem constant byte address 0x4 - core index']
  #allocation1 [shape = 'u32[144,128]{1,0:T(1,128)}', space=vmem, size = 0x12000, scoped, tag = 'internal scratch']
  #allocation2 [shape = 'bf16[8,9,128]{2,1,0:T(8,128)(2,1)}', space=vmem, size = 0x8000, scoped, tag = 'scratch operand']
  #allocation3 [shape = 'bf16[8,8,128]{2,1,0:T(8,128)(2,1)}', space=vmem, size = 0x4000, scoped, tag = 'scratch operand']
  %s0 = inlined_call_operand.vmem [shape: bf16[2,9,9,128], index: 0, kind: input, shape index: {}, may-alias: {0,1}]
  %s1 = inlined_call_operand.vmem [shape: bf16[2,9,9,128], index: 1, kind: input, shape index: {}, may-alias: {0,1}]
  %s2 = inlined_call_operand.vmem [shape: bf16[2,9,8,128], index: 2, kind: input, shape index: {}, may-alias: {2,3}]
  %s3 = inlined_call_operand.vmem [shape: bf16[2,9,8,128], index: 3, kind: input, shape index: {}, may-alias: {2,3}]
  %s4 = inlined_call_operand.vmem [shape: bf16[2,8,9,128], index: 4, kind: input, shape index: {}]
  %s5 = inlined_call_operand.vmem [shape: bf16[2,8,8,128], index: 5, kind: input, shape index: {}]
  %s6 = inlined_call_operand.vmem [shape: bf16[3,3,128,128], index: 6, kind: input, shape index: {}]
  %s7 = inlined_call_operand.vmem [shape: f32[1,128], index: 7, kind: input, shape index: {}]
  %s8 = inlined_call_operand.hbm [shape: f32[2,8,8,128], index: 8, kind: output, shape index: {}]
  %s9 = sld [smem:[#allocation0]]
  $region65: #{downsample_forward.1} parent=0
    _
  %s11 = ssub.s32 1, %s9
  %s12 = scalar_select 0, %s11, %s9
  $region1: #{downsample_forward.1} parent=0
    #allocation4 [shape = 'u8[65536]{0}', space=vmem, size = 0x10000, scoped, tag = 'output window, operand 0']
    #allocation5 [shape = 's32[2]{0}', space=sflag, size = 0x8, scoped, tag = 'scoped memory for downsample_forward.1']
    %13 = vsyncpa [#allocation5], 0
    %s14 = scalar_lea.sflag [#allocation5], 1
    %15 = vsyncpa %s14, 0
    loop: start=0, step=1, limit=4
    $region2: #{downsample_forward.1} parent=1 // loop_pre_header
      _
    $region3: #{downsample_forward.1} parent=1 // loop_header
      %s17 = sphi 0, %s21
      %p18 = scmp.ge.s32.totalorder %s17, 4
      %s24 = sphi 0, %s36
      %s25 = sphi 0, %s32
      %s26 = sphi 0, %s24
      %s27 = sphi 0, %s25
      %s28 = sphi 0, %s26
      %s29 = sphi 0, %s27
      %s41 = sphi 0, %s43
      %s44 = sphi 0, %s41
      %s45 = sphi 0, %s44
      %s61 = sphi 0, %s45
      %s73 = sphi 0, %s75
      %s76 = sphi 0, %s73
      %s77 = sphi 0, %s76
      %s93 = sphi 0, %s77
      %s101 = sphi 0, %s103
      %s104 = sphi 0, %s101
      %s105 = sphi 0, %s104
      %s121 = sphi 0, %s105
      %s133 = sphi 0, %s135
      %s136 = sphi 0, %s133
      %s137 = sphi 0, %s136
      %s153 = sphi 0, %s137
      %s161 = sphi 0, %s163
      %s164 = sphi 0, %s161
      %s165 = sphi 0, %s164
      %s181 = sphi 0, %s165
      %s189 = sphi 0, %s191
      %s192 = sphi 0, %s189
      %s193 = sphi 0, %s192
      %s209 = sphi 0, %s193
      %s213 = sphi 0, %s213
      %s215 = sphi 0, %s213
      %s216 = sphi 0, %s215
      %s230 = sphi 0, %s216
      %s234 = sphi 0, %s234
      %s236 = sphi 0, %s234
      %s237 = sphi 0, %s236
      %s251 = sphi 0, %s237
      %s259 = sphi 0, %s261
      %s262 = sphi 0, %s259
      %s263 = sphi 0, %s262
      %s279 = sphi 0, %s263
    $region4: #{downsample_forward.1} parent=1 // loop_header_branch
      %20 = sbr.rel (%p18) target = $region8
    $region5: #{downsample_forward.1} parent=1 // loop_body
      %s22 = ssub.s32 %s17, 1
      %s23 = ssub.s32 %s17, 2
      %s30 = sadd.s32 1, %s25
      %p31 = scmp.ge.s32.totalorder %s30, 1
      %s32 = scalar_select %p31, 0, %s30
      %s33 = sadd.s32 1, %s24
      %s34 = scalar_select %p31, %s33, %s24
      %p35 = scmp.ge.s32.totalorder %s34, 2
      %s36 = scalar_select %p35, 0, %s34
      %s37 = ssub.s32 %s24, %s36
      %s38 = ssub.s32 %s25, %s32
      %s39 = sor.u32 %s37, %s38
      %p40 = scmp.eq.s32.totalorder %s39, 0
      %s42 = sadd.s32 %s41, 1
      %s43 = scalar_select %p40, %s41, %s42
      %p46 = pneg %p40
      %p47 = scmp.eq.s32.totalorder %s17, 1
      %p48 = por %p46, %p47
      %p49 = scmp.ne.s32.totalorder %s41, %s44
      %p50 = scmp.eq.s32.totalorder %s17, 0
      %p51 = por %p49, %p50
      %p52 = scmp.ne.s32.totalorder %s41, %s44
      %p53 = scmp.eq.s32.totalorder %s22, 1
      %p54 = por %p52, %p53
      %p55 = scmp.ne.s32.totalorder %s44, %s45
      %p56 = scmp.eq.s32.totalorder %s22, 0
      %p57 = por %p55, %p56
      %p58 = scmp.ne.s32.totalorder %s44, %s45
      %p59 = scmp.eq.s32.totalorder %s23, 1
      %p60 = por %p58, %p59
      %p62 = scmp.ne.s32.totalorder %s45, %s61
      %p63 = scmp.eq.s32.totalorder %s23, 0
      %p64 = por %p62, %p63
      %s65 = sadd.s32 %s25, 1
      %s66 = smul.u32 %s65, 8
      %s67 = sadd.s32 %s32, 1
      %s68 = smul.u32 %s67, 8
      %s69 = ssub.s32 %s24, %s36
      %s70 = ssub.s32 %s66, %s68
      %s71 = sor.u32 %s69, %s70
      %p72 = scmp.eq.s32.totalorder %s71, 0
      %s74 = sadd.s32 %s73, 1
      %s75 = scalar_select %p72, %s73, %s74
      %p78 = pneg %p72
      %p79 = scmp.eq.s32.totalorder %s17, 1
      %p80 = por %p78, %p79
      %p81 = scmp.ne.s32.totalorder %s73, %s76
      %p82 = scmp.eq.s32.totalorder %s17, 0
      %p83 = por %p81, %p82
      %p84 = scmp.ne.s32.totalorder %s73, %s76
      %p85 = scmp.eq.s32.totalorder %s22, 1
      %p86 = por %p84, %p85
      %p87 = scmp.ne.s32.totalorder %s76, %s77
      %p88 = scmp.eq.s32.totalorder %s22, 0
      %p89 = por %p87, %p88
      %p90 = scmp.ne.s32.totalorder %s76, %s77
      %p91 = scmp.eq.s32.totalorder %s23, 1
      %p92 = por %p90, %p91
      %p94 = scmp.ne.s32.totalorder %s77, %s93
      %p95 = scmp.eq.s32.totalorder %s23, 0
      %p96 = por %p94, %p95
      %s97 = ssub.s32 %s24, %s36
      %s98 = ssub.s32 %s25, %s32
      %s99 = sor.u32 %s97, %s98
      %p100 = scmp.eq.s32.totalorder %s99, 0
      %s102 = sadd.s32 %s101, 1
      %s103 = scalar_select %p100, %s101, %s102
      %p106 = pneg %p100
      %p107 = scmp.eq.s32.totalorder %s17, 1
      %p108 = por %p106, %p107
      %p109 = scmp.ne.s32.totalorder %s101, %s104
      %p110 = scmp.eq.s32.totalorder %s17, 0
      %p111 = por %p109, %p110
      %p112 = scmp.ne.s32.totalorder %s101, %s104
      %p113 = scmp.eq.s32.totalorder %s22, 1
      %p114 = por %p112, %p113
      %p115 = scmp.ne.s32.totalorder %s104, %s105
      %p116 = scmp.eq.s32.totalorder %s22, 0
      %p117 = por %p115, %p116
      %p118 = scmp.ne.s32.totalorder %s104, %s105
      %p119 = scmp.eq.s32.totalorder %s23, 1
      %p120 = por %p118, %p119
      %p122 = scmp.ne.s32.totalorder %s105, %s121
      %p123 = scmp.eq.s32.totalorder %s23, 0
      %p124 = por %p122, %p123
      %s125 = sadd.s32 %s25, 1
      %s126 = smul.u32 %s125, 8
      %s127 = sadd.s32 %s32, 1
      %s128 = smul.u32 %s127, 8
      %s129 = ssub.s32 %s24, %s36
      %s130 = ssub.s32 %s126, %s128
      %s131 = sor.u32 %s129, %s130
      %p132 = scmp.eq.s32.totalorder %s131, 0
      %s134 = sadd.s32 %s133, 1
      %s135 = scalar_select %p132, %s133, %s134
      %p138 = pneg %p132
      %p139 = scmp.eq.s32.totalorder %s17, 1
      %p140 = por %p138, %p139
      %p141 = scmp.ne.s32.totalorder %s133, %s136
      %p142 = scmp.eq.s32.totalorder %s17, 0
      %p143 = por %p141, %p142
      %p144 = scmp.ne.s32.totalorder %s133, %s136
      %p145 = scmp.eq.s32.totalorder %s22, 1
      %p146 = por %p144, %p145
      %p147 = scmp.ne.s32.totalorder %s136, %s137
      %p148 = scmp.eq.s32.totalorder %s22, 0
      %p149 = por %p147, %p148
      %p150 = scmp.ne.s32.totalorder %s136, %s137
      %p151 = scmp.eq.s32.totalorder %s23, 1
      %p152 = por %p150, %p151
      %p154 = scmp.ne.s32.totalorder %s137, %s153
      %p155 = scmp.eq.s32.totalorder %s23, 0
      %p156 = por %p154, %p155
      %s157 = ssub.s32 %s24, %s36
      %s158 = ssub.s32 %s25, %s32
      %s159 = sor.u32 %s157, %s158
      %p160 = scmp.eq.s32.totalorder %s159, 0
      %s162 = sadd.s32 %s161, 1
      %s163 = scalar_select %p160, %s161, %s162
      %p166 = pneg %p160
      %p167 = scmp.eq.s32.totalorder %s17, 1
      %p168 = por %p166, %p167
      %p169 = scmp.ne.s32.totalorder %s161, %s164
      %p170 = scmp.eq.s32.totalorder %s17, 0
      %p171 = por %p169, %p170
      %p172 = scmp.ne.s32.totalorder %s161, %s164
      %p173 = scmp.eq.s32.totalorder %s22, 1
      %p174 = por %p172, %p173
      %p175 = scmp.ne.s32.totalorder %s164, %s165
      %p176 = scmp.eq.s32.totalorder %s22, 0
      %p177 = por %p175, %p176
      %p178 = scmp.ne.s32.totalorder %s164, %s165
      %p179 = scmp.eq.s32.totalorder %s23, 1
      %p180 = por %p178, %p179
      %p182 = scmp.ne.s32.totalorder %s165, %s181
      %p183 = scmp.eq.s32.totalorder %s23, 0
      %p184 = por %p182, %p183
      %s185 = ssub.s32 %s24, %s36
      %s186 = ssub.s32 %s25, %s32
      %s187 = sor.u32 %s185, %s186
      %p188 = scmp.eq.s32.totalorder %s187, 0
      %s190 = sadd.s32 %s189, 1
      %s191 = scalar_select %p188, %s189, %s190
      %p194 = pneg %p188
      %p195 = scmp.eq.s32.totalorder %s17, 1
      %p196 = por %p194, %p195
      %p197 = scmp.ne.s32.totalorder %s189, %s192
      %p198 = scmp.eq.s32.totalorder %s17, 0
      %p199 = por %p197, %p198
      %p200 = scmp.ne.s32.totalorder %s189, %s192
      %p201 = scmp.eq.s32.totalorder %s22, 1
      %p202 = por %p200, %p201
      %p203 = scmp.ne.s32.totalorder %s192, %s193
      %p204 = scmp.eq.s32.totalorder %s22, 0
      %p205 = por %p203, %p204
      %p206 = scmp.ne.s32.totalorder %s192, %s193
      %p207 = scmp.eq.s32.totalorder %s23, 1
      %p208 = por %p206, %p207
      %p210 = scmp.ne.s32.totalorder %s193, %s209
      %p211 = scmp.eq.s32.totalorder %s23, 0
      %p212 = por %p210, %p211
      %s214 = sadd.s32 %s213, 1
      %p217 = scmp.eq.s32.totalorder %s17, 1
      %p218 = scmp.ne.s32.totalorder %s213, %s215
      %p219 = scmp.eq.s32.totalorder %s17, 0
      %p220 = por %p218, %p219
      %p221 = scmp.ne.s32.totalorder %s213, %s215
      %p222 = scmp.eq.s32.totalorder %s22, 1
      %p223 = por %p221, %p222
      %p224 = scmp.ne.s32.totalorder %s215, %s216
      %p225 = scmp.eq.s32.totalorder %s22, 0
      %p226 = por %p224, %p225
      %p227 = scmp.ne.s32.totalorder %s215, %s216
      %p228 = scmp.eq.s32.totalorder %s23, 1
      %p229 = por %p227, %p228
      %p231 = scmp.ne.s32.totalorder %s216, %s230
      %p232 = scmp.eq.s32.totalorder %s23, 0
      %p233 = por %p231, %p232
      %s235 = sadd.s32 %s234, 1
      %p238 = scmp.eq.s32.totalorder %s17, 1
      %p239 = scmp.ne.s32.totalorder %s234, %s236
      %p240 = scmp.eq.s32.totalorder %s17, 0
      %p241 = por %p239, %p240
      %p242 = scmp.ne.s32.totalorder %s234, %s236
      %p243 = scmp.eq.s32.totalorder %s22, 1
      %p244 = por %p242, %p243
      %p245 = scmp.ne.s32.totalorder %s236, %s237
      %p246 = scmp.eq.s32.totalorder %s22, 0
      %p247 = por %p245, %p246
      %p248 = scmp.ne.s32.totalorder %s236, %s237
      %p249 = scmp.eq.s32.totalorder %s23, 1
      %p250 = por %p248, %p249
      %p252 = scmp.ne.s32.totalorder %s237, %s251
      %p253 = scmp.eq.s32.totalorder %s23, 0
      %p254 = por %p252, %p253
      %s255 = ssub.s32 %s24, %s36
      %s256 = ssub.s32 %s25, %s32
      %s257 = sor.u32 %s255, %s256
      %p258 = scmp.eq.s32.totalorder %s257, 0
      %s260 = sadd.s32 %s259, 1
      %s261 = scalar_select %p258, %s259, %s260
      %p264 = pneg %p258
      %p265 = scmp.eq.s32.totalorder %s17, 1
      %p266 = por %p264, %p265
      %p267 = scmp.ne.s32.totalorder %s259, %s262
      %p268 = scmp.eq.s32.totalorder %s17, 0
      %p269 = por %p267, %p268
      %p270 = scmp.ne.s32.totalorder %s259, %s262
      %p271 = scmp.eq.s32.totalorder %s22, 1
      %p272 = por %p270, %p271
      %p273 = scmp.ne.s32.totalorder %s262, %s263
      %p274 = scmp.eq.s32.totalorder %s22, 0
      %p275 = por %p273, %p274
      %p276 = scmp.ne.s32.totalorder %s262, %s263
      %p277 = scmp.eq.s32.totalorder %s23, 1
      %p278 = por %p276, %p277
      %p280 = scmp.ne.s32.totalorder %s263, %s279
      %p281 = scmp.eq.s32.totalorder %s23, 0
      %p282 = por %p280, %p281
      %p283 = scmp.le.s32.totalorder 1, %s17
      %p284 = scmp.lt.s32.totalorder %s17, 3
      %p285 = pnand %p283, %p284
      %p286 = pneg %p285
      // Predicated region
      $region9: #{downsample_forward.1} parent=5 // pred_check
        _
      $region10: #{downsample_forward.1} parent=5 // pred_check_branch
        %288 = sbr.rel (%p285) target = $region12
      $region11: #{downsample_forward.1} parent=5 // pred_region
        %s289 = ssub.s32 %s17, 1
        // Predicated region
        $region13: #{downsample_forward.1} parent=11 // pred_check
          %p290 = pneg %p226
        $region14: #{downsample_forward.1} parent=11 // pred_check_branch
          %292 = sbr.rel (%p290) target = $region16
        $region15: #{downsample_forward.1} parent=11 // pred_region
          _
        $region16: #{downsample_forward.1} parent=11 // pred_fallthru
          _
        // Predicated region
        $region17: #{downsample_forward.1} parent=11 // pred_check
          %p293 = pneg %p247
        $region18: #{downsample_forward.1} parent=11 // pred_check_branch
          %295 = sbr.rel (%p293) target = $region20
        $region19: #{downsample_forward.1} parent=11 // pred_region
          _
        $region20: #{downsample_forward.1} parent=11 // pred_fallthru
          _
      $region12: #{downsample_forward.1} parent=5 // pred_fallthru
        _
      %p296 = scmp.lt.s32.totalorder %s17, 2
      // Predicated region
      $region21: #{downsample_forward.1} parent=5 // pred_check
        %p297 = pneg %p296
      $region22: #{downsample_forward.1} parent=5 // pred_check_branch
        %299 = sbr.rel (%p297) target = $region24
      $region23: #{downsample_forward.1} parent=5 // pred_region
        // Predicated region
        $region25: #{downsample_forward.1} parent=23 // pred_check
          %p300 = pneg %p51
        $region26: #{downsample_forward.1} parent=23 // pred_check_branch
          %302 = sbr.rel (%p300) target = $region28
        $region27: #{downsample_forward.1} parent=23 // pred_region
          %s303 = smul.u32 8, %s25
          %s304 = ssub.s32 9, %s303
          %p305 = scmp.lt.s32.totalorder %s304, 8
          %s306 = scalar_select %p305, %s304, 8
          %s307 = smul.u32 64, %s306
          %s308 = smul.u32 %s307, 2
          %p309 = scmp.lt.s32.totalorder %s24, 1
          %s310 = scalar_select %p309, %s24, 1
          %p311 = scmp.lt.s32.totalorder %s303, 8
          %s312 = scalar_select %p311, %s303, 8
          %s313 = smul.addr %s312, 2
          %s314 = smul.addr %s310, 18
          %s315 = sadd.s32 %s313, %s314
          %s316 = smul.addr %s315, 4
          %s317 = scalar_lea.vmem %s0, %s316
          %s318 = smul.u32 8, %s25
          %s319 = ssub.s32 9, %s318
          %p320 = scmp.lt.s32.totalorder %s319, 8
          %s321 = scalar_select %p320, %s319, 8
          %s322 = smul.u32 64, %s321
          %s323 = smul.u32 %s322, 2
        $region28: #{downsample_forward.1} parent=23 // pred_fallthru
          _
        // Predicated region
        $region29: #{downsample_forward.1} parent=23 // pred_check
          %p324 = pneg %p83
        $region30: #{downsample_forward.1} parent=23 // pred_check_branch
          %326 = sbr.rel (%p324) target = $region32
        $region31: #{downsample_forward.1} parent=23 // pred_region
          %s327 = sadd.s32 %s25, 1
          %s328 = smul.u32 %s327, 8
          %p329 = scmp.lt.s32.totalorder %s24, 1
          %s330 = scalar_select %p329, %s24, 1
          %p331 = scmp.lt.s32.totalorder %s328, 8
          %s332 = scalar_select %p331, %s328, 8
          %s333 = smul.addr %s332, 2
          %s334 = smul.addr %s330, 18
          %s335 = sadd.s32 %s333, %s334
          %s336 = smul.addr %s335, 4
          %s337 = scalar_lea.vmem %s1, %s336
          %s338 = sadd.s32 %s25, 1
          %s339 = smul.u32 %s338, 8
        $region32: #{downsample_forward.1} parent=23 // pred_fallthru
          _
        // Predicated region
        $region33: #{downsample_forward.1} parent=23 // pred_check
          %p340 = pneg %p111
        $region34: #{downsample_forward.1} parent=23 // pred_check_branch
          %342 = sbr.rel (%p340) target = $region36
        $region35: #{downsample_forward.1} parent=23 // pred_region
          %s343 = smul.u32 8, %s25
          %s344 = ssub.s32 9, %s343
          %p345 = scmp.lt.s32.totalorder %s344, 8
          %s346 = scalar_select %p345, %s344, 8
          %s347 = smul.u32 64, %s346
          %p348 = scmp.lt.s32.totalorder %s24, 1
          %s349 = scalar_select %p348, %s24, 1
          %p350 = scmp.lt.s32.totalorder %s343, 8
          %s351 = scalar_select %p350, %s343, 8
          %s352 = smul.addr %s349, 9
          %s353 = sadd.s32 %s351, %s352
          %s354 = smul.addr %s353, 4
          %s355 = scalar_lea.vmem %s2, %s354
          %s356 = smul.u32 8, %s25
          %s357 = ssub.s32 9, %s356
          %p358 = scmp.lt.s32.totalorder %s357, 8
          %s359 = scalar_select %p358, %s357, 8
          %s360 = smul.u32 64, %s359
        $region36: #{downsample_forward.1} parent=23 // pred_fallthru
          _
        // Predicated region
        $region37: #{downsample_forward.1} parent=23 // pred_check
          %p361 = pneg %p143
        $region38: #{downsample_forward.1} parent=23 // pred_check_branch
          %363 = sbr.rel (%p361) target = $region40
        $region39: #{downsample_forward.1} parent=23 // pred_region
          %s364 = sadd.s32 %s25, 1
          %s365 = smul.u32 %s364, 8
          %p366 = scmp.lt.s32.totalorder %s24, 1
          %s367 = scalar_select %p366, %s24, 1
          %p368 = scmp.lt.s32.totalorder %s365, 8
          %s369 = scalar_select %p368, %s365, 8
          %s370 = smul.addr %s367, 9
          %s371 = sadd.s32 %s369, %s370
          %s372 = smul.addr %s371, 4
          %s373 = scalar_lea.vmem %s3, %s372
          %s374 = sadd.s32 %s25, 1
          %s375 = smul.u32 %s374, 8
        $region40: #{downsample_forward.1} parent=23 // pred_fallthru
          _
        // Predicated region
        $region41: #{downsample_forward.1} parent=23 // pred_check
          %p376 = pneg %p171
        $region42: #{downsample_forward.1} parent=23 // pred_check_branch
          %378 = sbr.rel (%p376) target = $region44
        $region43: #{downsample_forward.1} parent=23 // pred_region
          %s379 = smul.u32 8, %s25
          %p380 = scmp.lt.s32.totalorder %s24, 1
          %s381 = scalar_select %p380, %s24, 1
          %p382 = scmp.lt.s32.totalorder %s379, 7
          %s383 = scalar_select %p382, %s379, 7
          %s384 = smul.addr %s383, 2
          %s385 = smul.addr %s381, 16
          %s386 = sadd.s32 %s384, %s385
          %s387 = smul.addr %s386, 4
          %s388 = scalar_lea.vmem %s4, %s387
          %s389 = smul.u32 8, %s25
        $region44: #{downsample_forward.1} parent=23 // pred_fallthru
          _
        // Predicated region
        $region45: #{downsample_forward.1} parent=23 // pred_check
          %p390 = pneg %p199
        $region46: #{downsample_forward.1} parent=23 // pred_check_branch
          %392 = sbr.rel (%p390) target = $region48
        $region47: #{downsample_forward.1} parent=23 // pred_region
          %s393 = smul.u32 8, %s25
          %p394 = scmp.lt.s32.totalorder %s24, 1
          %s395 = scalar_select %p394, %s24, 1
          %p396 = scmp.lt.s32.totalorder %s393, 7
          %s397 = scalar_select %p396, %s393, 7
          %s398 = smul.addr %s395, 8
          %s399 = sadd.s32 %s397, %s398
          %s400 = smul.addr %s399, 4
          %s401 = scalar_lea.vmem %s5, %s400
          %s402 = smul.u32 8, %s25
        $region48: #{downsample_forward.1} parent=23 // pred_fallthru
          _
      $region24: #{downsample_forward.1} parent=5 // pred_fallthru
        _
      %p403 = scmp.le.s32.totalorder 1, %s17
      %p404 = scmp.lt.s32.totalorder %s17, 3
      %p405 = pnand %p403, %p404
      %p406 = pneg %p405
      // Predicated region
      $region49: #{downsample_forward.1} parent=5 // pred_check
        _
      $region50: #{downsample_forward.1} parent=5 // pred_check_branch
        %408 = sbr.rel (%p405) target = $region52
      $region51: #{downsample_forward.1} parent=5 // pred_region
        %s409 = ssub.s32 %s17, 1
        %s410 = smul.u32 8, %s27
        %s411 = ssub.s32 9, %s410
        %p412 = scmp.lt.s32.totalorder %s411, 8
        %s413 = scalar_select %p412, %s411, 8
        %s414 = smul.u32 64, %s413
        %s415 = smul.u32 %s414, 2
        %p416 = scmp.lt.s32.totalorder %s26, 1
        %s417 = scalar_select %p416, %s26, 1
        %p418 = scmp.lt.s32.totalorder %s410, 8
        %s419 = scalar_select %p418, %s410, 8
        %s420 = smul.addr %s419, 2
        %s421 = smul.addr %s417, 18
        %s422 = sadd.s32 %s420, %s421
        %s423 = smul.addr %s422, 4
        %s424 = scalar_lea.vmem %s0, %s423
        %p425 = pneg %p57
        %p426 = pneg %p54
        %s427 = sadd.s32 %s27, 1
        %s428 = smul.u32 %s427, 8
        %p429 = scmp.lt.s32.totalorder %s26, 1
        %s430 = scalar_select %p429, %s26, 1
        %p431 = scmp.lt.s32.totalorder %s428, 8
        %s432 = scalar_select %p431, %s428, 8
        %s433 = smul.addr %s432, 2
        %s434 = smul.addr %s430, 18
        %s435 = sadd.s32 %s433, %s434
        %s436 = smul.addr %s435, 4
        %s437 = scalar_lea.vmem %s1, %s436
        %p438 = pneg %p89
        %p439 = pneg %p86
        %s440 = smul.u32 8, %s27
        %s441 = ssub.s32 9, %s440
        %p442 = scmp.lt.s32.totalorder %s441, 8
        %s443 = scalar_select %p442, %s441, 8
        %s444 = smul.u32 64, %s443
        %p445 = scmp.lt.s32.totalorder %s26, 1
        %s446 = scalar_select %p445, %s26, 1
        %p447 = scmp.lt.s32.totalorder %s440, 8
        %s448 = scalar_select %p447, %s440, 8
        %s449 = smul.addr %s446, 9
        %s450 = sadd.s32 %s448, %s449
        %s451 = smul.addr %s450, 4
        %s452 = scalar_lea.vmem %s2, %s451
        %p453 = pneg %p117
        %p454 = pneg %p114
        %s455 = sadd.s32 %s27, 1
        %s456 = smul.u32 %s455, 8
        %p457 = scmp.lt.s32.totalorder %s26, 1
        %s458 = scalar_select %p457, %s26, 1
        %p459 = scmp.lt.s32.totalorder %s456, 8
        %s460 = scalar_select %p459, %s456, 8
        %s461 = smul.addr %s458, 9
        %s462 = sadd.s32 %s460, %s461
        %s463 = smul.addr %s462, 4
        %s464 = scalar_lea.vmem %s3, %s463
        %p465 = pneg %p149
        %p466 = pneg %p146
        %s467 = smul.u32 8, %s27
        %p468 = scmp.lt.s32.totalorder %s26, 1
        %s469 = scalar_select %p468, %s26, 1
        %p470 = scmp.lt.s32.totalorder %s467, 7
        %s471 = scalar_select %p470, %s467, 7
        %s472 = smul.addr %s471, 2
        %s473 = smul.addr %s469, 16
        %s474 = sadd.s32 %s472, %s473
        %s475 = smul.addr %s474, 4
        %s476 = scalar_lea.vmem %s4, %s475
        %p477 = pneg %p177
        %p478 = pneg %p174
        %s479 = smul.u32 8, %s27
        %p480 = scmp.lt.s32.totalorder %s26, 1
        %s481 = scalar_select %p480, %s26, 1
        %p482 = scmp.lt.s32.totalorder %s479, 7
        %s483 = scalar_select %p482, %s479, 7
        %s484 = smul.addr %s481, 8
        %s485 = sadd.s32 %s483, %s484
        %s486 = smul.addr %s485, 4
        %s487 = scalar_lea.vmem %s5, %s486
        %p488 = pneg %p205
        %p489 = pneg %p202
        %p490 = pneg %p226
        %p491 = pneg %p223
        %p492 = pneg %p247
        %p493 = pneg %p244
        %p494 = pneg %p275
        %p495 = pneg %p272
        %s496 = sand.u32 %s262, 1
        %s497 = scalar_lea.sflag [#allocation5], %s496
        %s498 = sand.u32 %s262, 1
        %s499 = smul.addr %s498, 64
        %s500 = scalar_lea.vmem [#allocation4], %s499
        %s501 = smul.u32 8, %s27
        %s502 = ssub.s32 9, %s501
        %p503 = scmp.lt.s32.totalorder %s502, 8
        %s504 = scalar_select %p503, %s502, 8
        %s505 = smul.u32 64, %s504
        %s506 = smul.u32 %s505, 2
        %p507 = scmp.lt.s32.totalorder %s26, 1
        %s508 = scalar_select %p507, %s26, 1
        %p509 = scmp.lt.s32.totalorder %s501, 8
        %s510 = scalar_select %p509, %s501, 8
        %s511 = smul.addr %s510, 2
        %s512 = smul.addr %s508, 18
        %s513 = sadd.s32 %s511, %s512
        %s514 = smul.addr %s513, 4
        %s515 = scalar_lea.vmem %s0, %s514
        %s516 = smul.u32 8, %s27
        %s517 = ssub.s32 9, %s516
        %p518 = scmp.lt.s32.totalorder %s517, 8
        %s519 = scalar_select %p518, %s517, 8
        %s520 = smul.u32 64, %s519
        %s521 = smul.u32 %s520, 2
        %s522 = sadd.s32 %s27, 1
        %s523 = smul.u32 %s522, 8
        %p524 = scmp.lt.s32.totalorder %s26, 1
        %s525 = scalar_select %p524, %s26, 1
        %p526 = scmp.lt.s32.totalorder %s523, 8
        %s527 = scalar_select %p526, %s523, 8
        %s528 = smul.addr %s527, 2
        %s529 = smul.addr %s525, 18
        %s530 = sadd.s32 %s528, %s529
        %s531 = smul.addr %s530, 4
        %s532 = scalar_lea.vmem %s1, %s531
        %s533 = sadd.s32 %s27, 1
        %s534 = smul.u32 %s533, 8
        %s535 = smul.u32 8, %s27
        %s536 = ssub.s32 9, %s535
        %p537 = scmp.lt.s32.totalorder %s536, 8
        %s538 = scalar_select %p537, %s536, 8
        %s539 = smul.u32 64, %s538
        %p540 = scmp.lt.s32.totalorder %s26, 1
        %s541 = scalar_select %p540, %s26, 1
        %p542 = scmp.lt.s32.totalorder %s535, 8
        %s543 = scalar_select %p542, %s535, 8
        %s544 = smul.addr %s541, 9
        %s545 = sadd.s32 %s543, %s544
        %s546 = smul.addr %s545, 4
        %s547 = scalar_lea.vmem %s2, %s546
        %s548 = smul.u32 8, %s27
        %s549 = ssub.s32 9, %s548
        %p550 = scmp.lt.s32.totalorder %s549, 8
        %s551 = scalar_select %p550, %s549, 8
        %s552 = smul.u32 64, %s551
        %s553 = sadd.s32 %s27, 1
        %s554 = smul.u32 %s553, 8
        %p555 = scmp.lt.s32.totalorder %s26, 1
        %s556 = scalar_select %p555, %s26, 1
        %p557 = scmp.lt.s32.totalorder %s554, 8
        %s558 = scalar_select %p557, %s554, 8
        %s559 = smul.addr %s556, 9
        %s560 = sadd.s32 %s558, %s559
        %s561 = smul.addr %s560, 4
        %s562 = scalar_lea.vmem %s3, %s561
        %s563 = sadd.s32 %s27, 1
        %s564 = smul.u32 %s563, 8
        %s565 = smul.u32 8, %s27
        %p566 = scmp.lt.s32.totalorder %s26, 1
        %s567 = scalar_select %p566, %s26, 1
        %p568 = scmp.lt.s32.totalorder %s565, 7
        %s569 = scalar_select %p568, %s565, 7
        %s570 = smul.addr %s569, 2
        %s571 = smul.addr %s567, 16
        %s572 = sadd.s32 %s570, %s571
        %s573 = smul.addr %s572, 4
        %s574 = scalar_lea.vmem %s4, %s573
        %s575 = smul.u32 8, %s27
        %s576 = smul.u32 8, %s27
        %p577 = scmp.lt.s32.totalorder %s26, 1
        %s578 = scalar_select %p577, %s26, 1
        %p579 = scmp.lt.s32.totalorder %s576, 7
        %s580 = scalar_select %p579, %s576, 7
        %s581 = smul.addr %s578, 8
        %s582 = sadd.s32 %s580, %s581
        %s583 = smul.addr %s582, 4
        %s584 = scalar_lea.vmem %s5, %s583
        %s585 = smul.u32 8, %s27
        %s586 = smul.u32 8, %s27
        %s588 = scalar_lea.vmem %s515, 8
        %v589 = vld [vmem:[%s588] sm:$0xf]
        %v590 = vld [vmem:[%s588 + $0x4] sm:$0x1]
        %v591 = vld [vmem:[%s588 + $0x8] sm:$0xf]
        %v592 = vld [vmem:[%s588 + $0xc] sm:$0x1]
        %v593 = vld [vmem:[%s588 + $0x10] sm:$0xf]
        %v594 = vld [vmem:[%s588 + $0x14] sm:$0x1]
        %v595 = vld [vmem:[%s588 + $0x18] sm:$0xf]
        %v596 = vld [vmem:[%s588 + $0x1c] sm:$0x1]
        %v597 = vld [vmem:[%s588 + $0x20] sm:$0xf]
        %v598 = vld [vmem:[%s588 + $0x24] sm:$0x1]
        %v599 = vld [vmem:[%s588 + $0x28] sm:$0xf]
        %v600 = vld [vmem:[%s588 + $0x2c] sm:$0x1]
        %v601 = vld [vmem:[%s588 + $0x30] sm:$0xf]
        %v602 = vld [vmem:[%s588 + $0x34] sm:$0x1]
        %603 = vst [vmem:[#allocation2] sm:$0xf] %v589
        %vm604 = vcmask 1040384
        %vm605 = vsmask.f32 256
        %vm606 = vmand %vm604, %vm605
        %v607 = vld [vmem:[#allocation2 + $0x4] sm:$0x1]
        %v608 = vsel %vm606, %v590, %v607
        %609 = vst [vmem:[#allocation2 + $0x4] sm:$0x1] %v608
        %610 = vst [vmem:[#allocation2 + $0x8] sm:$0xf] %v591
        %v611 = vld [vmem:[#allocation2 + $0xc] sm:$0x1]
        %v612 = vsel %vm606, %v592, %v611
        %613 = vst [vmem:[#allocation2 + $0xc] sm:$0x1] %v612
        %614 = vst [vmem:[#allocation2 + $0x10] sm:$0xf] %v593
        %v615 = vld [vmem:[#allocation2 + $0x14] sm:$0x1]
        %v616 = vsel %vm606, %v594, %v615
        %617 = vst [vmem:[#allocation2 + $0x14] sm:$0x1] %v616
        %618 = vst [vmem:[#allocation2 + $0x18] sm:$0xf] %v595
        %v619 = vld [vmem:[#allocation2 + $0x1c] sm:$0x1]
        %v620 = vsel %vm606, %v596, %v619
        %621 = vst [vmem:[#allocation2 + $0x1c] sm:$0x1] %v620
        %622 = vst [vmem:[#allocation2 + $0x20] sm:$0xf] %v597
        %v623 = vld [vmem:[#allocation2 + $0x24] sm:$0x1]
        %v624 = vsel %vm606, %v598, %v623
        %625 = vst [vmem:[#allocation2 + $0x24] sm:$0x1] %v624
        %626 = vst [vmem:[#allocation2 + $0x28] sm:$0xf] %v599
        %v627 = vld [vmem:[#allocation2 + $0x2c] sm:$0x1]
        %v628 = vsel %vm606, %v600, %v627
        %629 = vst [vmem:[#allocation2 + $0x2c] sm:$0x1] %v628
        %630 = vst [vmem:[#allocation2 + $0x30] sm:$0xf] %v601
        %v631 = vld [vmem:[#allocation2 + $0x34] sm:$0x1]
        %v632 = vsel %vm606, %v602, %v631
        %633 = vst [vmem:[#allocation2 + $0x34] sm:$0x1] %v632
        %s634 = scalar_lea.vmem %s547, 4
        %v635 = vld [vmem:[%s634] sm:$0xf]
        %v636 = vld [vmem:[%s634 + $0x4] sm:$0xf]
        %v637 = vld [vmem:[%s634 + $0x8] sm:$0xf]
        %v638 = vld [vmem:[%s634 + $0xc] sm:$0xf]
        %v639 = vld [vmem:[%s634 + $0x10] sm:$0xf]
        %v640 = vld [vmem:[%s634 + $0x14] sm:$0xf]
        %v641 = vld [vmem:[%s634 + $0x18] sm:$0xf]
        %642 = vst [vmem:[#allocation3] sm:$0xf] %v635
        %643 = vst [vmem:[#allocation3 + $0x4] sm:$0xf] %v636
        %644 = vst [vmem:[#allocation3 + $0x8] sm:$0xf] %v637
        %645 = vst [vmem:[#allocation3 + $0xc] sm:$0xf] %v638
        %646 = vst [vmem:[#allocation3 + $0x10] sm:$0xf] %v639
        %647 = vst [vmem:[#allocation3 + $0x14] sm:$0xf] %v640
        %648 = vst [vmem:[#allocation3 + $0x18] sm:$0xf] %v641
        %v649 = vld [vmem:[%s532] sm:$0xf]
        %v650 = vld [vmem:[%s532 + $0x4] sm:$0x1]
        %s651 = scalar_lea.vmem [#allocation2], 56
        %652 = vst [vmem:[%s651] sm:$0xf] %v649
        %v653 = vld [vmem:[%s651 + $0x4] sm:$0x1]
        %v654 = vsel %vm606, %v650, %v653
        %655 = vst [vmem:[%s651 + $0x4] sm:$0x1] %v654
        %v656 = vld [vmem:[%s562] sm:$0xf]
        %s657 = scalar_lea.vmem [#allocation3], 28
        %658 = vst [vmem:[%s657] sm:$0xf] %v656
        %v659 = vld [vmem:[%s515] sm:$0xf]
        %v660 = vld [vmem:[%s515 + $0x4] sm:$0x1]
        %v661 = vld [vmem:[%s515 + $0x8] sm:$0xf]
        %v662 = vld [vmem:[%s515 + $0xc] sm:$0x1]
        %v663 = vld [vmem:[%s515 + $0x10] sm:$0xf]
        %v664 = vld [vmem:[%s515 + $0x14] sm:$0x1]
        %v665 = vld [vmem:[%s515 + $0x18] sm:$0xf]
        %v666 = vld [vmem:[%s515 + $0x1c] sm:$0x1]
        %v667 = vld [vmem:[%s515 + $0x20] sm:$0xf]
        %v668 = vld [vmem:[%s515 + $0x24] sm:$0x1]
        %v669 = vld [vmem:[%s515 + $0x28] sm:$0xf]
        %v670 = vld [vmem:[%s515 + $0x2c] sm:$0x1]
        %v671 = vld [vmem:[%s515 + $0x30] sm:$0xf]
        %v672 = vld [vmem:[%s515 + $0x34] sm:$0x1]
        %v673 = vld [vmem:[%s515 + $0x38] sm:$0xf]
        %v674 = vld [vmem:[%s515 + $0x3c] sm:$0x1]
        %v675 = vld [vmem:[%s547] sm:$0xf]
        %v676 = vld [vmem:[%s547 + $0x4] sm:$0xf]
        %v677 = vld [vmem:[%s547 + $0x8] sm:$0xf]
        %v678 = vld [vmem:[%s547 + $0xc] sm:$0xf]
        %v679 = vld [vmem:[%s547 + $0x10] sm:$0xf]
        %v680 = vld [vmem:[%s547 + $0x14] sm:$0xf]
        %v681 = vld [vmem:[%s547 + $0x18] sm:$0xf]
        %v682 = vld [vmem:[%s547 + $0x1c] sm:$0xf]
        %v683 = vld [vmem:[%s574] sm:$0xf]
        %v684 = vld [vmem:[%s574 + $0x4] sm:$0x1]
        %v685 = vld [vmem:[%s574 + $0x8] sm:$0xf]
        %v686 = vld [vmem:[%s574 + $0xc] sm:$0x1]
        %v687 = vld [vmem:[%s574 + $0x10] sm:$0xf]
        %v688 = vld [vmem:[%s574 + $0x14] sm:$0x1]
        %v689 = vld [vmem:[%s574 + $0x18] sm:$0xf]
        %v690 = vld [vmem:[%s574 + $0x1c] sm:$0x1]
        %v691 = vld [vmem:[%s574 + $0x20] sm:$0xf]
        %v692 = vld [vmem:[%s574 + $0x24] sm:$0x1]
        %v693 = vld [vmem:[%s574 + $0x28] sm:$0xf]
        %v694 = vld [vmem:[%s574 + $0x2c] sm:$0x1]
        %v695 = vld [vmem:[%s574 + $0x30] sm:$0xf]
        %v696 = vld [vmem:[%s574 + $0x34] sm:$0x1]
        %v697 = vld [vmem:[%s574 + $0x38] sm:$0xf]
        %v698 = vld [vmem:[%s574 + $0x3c] sm:$0x1]
        %v699 = vld [vmem:[%s584] sm:$0xf]
        %v700 = vld [vmem:[%s584 + $0x4] sm:$0xf]
        %v701 = vld [vmem:[%s584 + $0x8] sm:$0xf]
        %v702 = vld [vmem:[%s584 + $0xc] sm:$0xf]
        %v703 = vld [vmem:[%s584 + $0x10] sm:$0xf]
        %v704 = vld [vmem:[%s584 + $0x14] sm:$0xf]
        %v705 = vld [vmem:[%s584 + $0x18] sm:$0xf]
        %v706 = vld [vmem:[%s584 + $0x1c] sm:$0xf]
        %v707 = vld [vmem:[#allocation2] sm:$0xf]
        %v708 = vld [vmem:[#allocation2 + $0x4] sm:$0x1]
        %v709 = vld [vmem:[#allocation2 + $0x8] sm:$0xf]
        %v710 = vld [vmem:[#allocation2 + $0xc] sm:$0x1]
        %v711 = vld [vmem:[#allocation2 + $0x10] sm:$0xf]
        %v712 = vld [vmem:[#allocation2 + $0x14] sm:$0x1]
        %v713 = vld [vmem:[#allocation2 + $0x18] sm:$0xf]
        %v714 = vld [vmem:[#allocation2 + $0x1c] sm:$0x1]
        %v715 = vld [vmem:[#allocation2 + $0x20] sm:$0xf]
        %v716 = vld [vmem:[#allocation2 + $0x24] sm:$0x1]
        %v717 = vld [vmem:[#allocation2 + $0x28] sm:$0xf]
        %v718 = vld [vmem:[#allocation2 + $0x2c] sm:$0x1]
        %v719 = vld [vmem:[#allocation2 + $0x30] sm:$0xf]
        %v720 = vld [vmem:[#allocation2 + $0x34] sm:$0x1]
        %v721 = vld [vmem:[#allocation2 + $0x38] sm:$0xf]
        %v722 = vld [vmem:[#allocation2 + $0x3c] sm:$0x1]
        %v723 = vld [vmem:[#allocation3] sm:$0xf]
        %v724 = vld [vmem:[#allocation3 + $0x4] sm:$0xf]
        %v725 = vld [vmem:[#allocation3 + $0x8] sm:$0xf]
        %v726 = vld [vmem:[#allocation3 + $0xc] sm:$0xf]
        %v727 = vld [vmem:[#allocation3 + $0x10] sm:$0xf]
        %v728 = vld [vmem:[#allocation3 + $0x14] sm:$0xf]
        %v729 = vld [vmem:[#allocation3 + $0x18] sm:$0xf]
        %v730 = vld [vmem:[#allocation3 + $0x1c] sm:$0xf]
        %vm731 = vsmask.f32 3328
        %vm732 = vsmask.f32 7440
        %vm733 = vmor %vm731, %vm732
        %v735 = vshrl.u32 %v659, 16
        %v737 = vrot.slane %v735, 4
        %v738 = vshll.u32 %v659, 16
        %v740 = vrot.slane %v738, 5
        %v741 = vor.u32 %v737, %v740
        %v742 = vrot.slane %v741, 4
        %v744 = vshll.u32 %v660, 16
        %v746 = vrot.slane %v744, 5
        %v747 = vsel %vm733, %v742, %v746
        %v749 = vshrl.u32 %v661, 16
        %v751 = vrot.slane %v749, 4
        %v752 = vshll.u32 %v661, 16
        %v754 = vrot.slane %v752, 5
        %v755 = vor.u32 %v751, %v754
        %v756 = vrot.slane %v755, 4
        %v758 = vshll.u32 %v662, 16
        %v760 = vrot.slane %v758, 5
        %v761 = vsel %vm733, %v756, %v760
        %v763 = vshrl.u32 %v663, 16
        %v765 = vrot.slane %v763, 4
        %v766 = vshll.u32 %v663, 16
        %v768 = vrot.slane %v766, 5
        %v769 = vor.u32 %v765, %v768
        %v770 = vrot.slane %v769, 4
        %v772 = vshll.u32 %v664, 16
        %v774 = vrot.slane %v772, 5
        %v775 = vsel %vm733, %v770, %v774
        %v777 = vshrl.u32 %v665, 16
        %v779 = vrot.slane %v777, 4
        %v780 = vshll.u32 %v665, 16
        %v782 = vrot.slane %v780, 5
        %v783 = vor.u32 %v779, %v782
        %v784 = vrot.slane %v783, 4
        %v786 = vshll.u32 %v666, 16
        %v788 = vrot.slane %v786, 5
        %v789 = vsel %vm733, %v784, %v788
        %v791 = vshrl.u32 %v667, 16
        %v793 = vrot.slane %v791, 4
        %v794 = vshll.u32 %v667, 16
        %v796 = vrot.slane %v794, 5
        %v797 = vor.u32 %v793, %v796
        %v798 = vrot.slane %v797, 4
        %v800 = vshll.u32 %v668, 16
        %v802 = vrot.slane %v800, 5
        %v803 = vsel %vm733, %v798, %v802
        %v805 = vshrl.u32 %v669, 16
        %v807 = vrot.slane %v805, 4
        %v808 = vshll.u32 %v669, 16
        %v810 = vrot.slane %v808, 5
        %v811 = vor.u32 %v807, %v810
        %v812 = vrot.slane %v811, 4
        %v814 = vshll.u32 %v670, 16
        %v816 = vrot.slane %v814, 5
        %v817 = vsel %vm733, %v812, %v816
        %v819 = vshrl.u32 %v671, 16
        %v821 = vrot.slane %v819, 4
        %v822 = vshll.u32 %v671, 16
        %v824 = vrot.slane %v822, 5
        %v825 = vor.u32 %v821, %v824
        %v826 = vrot.slane %v825, 4
        %v828 = vshll.u32 %v672, 16
        %v830 = vrot.slane %v828, 5
        %v831 = vsel %vm733, %v826, %v830
        %v833 = vshrl.u32 %v673, 16
        %v835 = vrot.slane %v833, 4
        %v836 = vshll.u32 %v673, 16
        %v838 = vrot.slane %v836, 5
        %v839 = vor.u32 %v835, %v838
        %v840 = vrot.slane %v839, 4
        %v842 = vshll.u32 %v674, 16
        %v844 = vrot.slane %v842, 5
        %v845 = vsel %vm733, %v840, %v844
        %v846 = vld [vmem:[%s6] sm:$0xf]
        %v847 = vld [vmem:[%s6 + $0x4] sm:$0xf]
        %v848 = vld [vmem:[%s6 + $0x8] sm:$0xf]
        %v849 = vld [vmem:[%s6 + $0xc] sm:$0xf]
        %v850 = vld [vmem:[%s6 + $0x10] sm:$0xf]
        %v851 = vld [vmem:[%s6 + $0x14] sm:$0xf]
        %v852 = vld [vmem:[%s6 + $0x18] sm:$0xf]
        %v853 = vld [vmem:[%s6 + $0x1c] sm:$0xf]
        %v854 = vld [vmem:[%s6 + $0x20] sm:$0xf]
        %v855 = vld [vmem:[%s6 + $0x24] sm:$0xf]
        %v856 = vld [vmem:[%s6 + $0x28] sm:$0xf]
        %v857 = vld [vmem:[%s6 + $0x2c] sm:$0xf]
        %v858 = vld [vmem:[%s6 + $0x30] sm:$0xf]
        %v859 = vld [vmem:[%s6 + $0x34] sm:$0xf]
        %v860 = vld [vmem:[%s6 + $0x38] sm:$0xf]
        %v861 = vld [vmem:[%s6 + $0x3c] sm:$0xf]
        %s862 = scalar_lea.vmem %s6, 64
        %v863 = vld [vmem:[%s862] sm:$0xf]
        %v864 = vld [vmem:[%s862 + $0x4] sm:$0xf]
        %v865 = vld [vmem:[%s862 + $0x8] sm:$0xf]
        %v866 = vld [vmem:[%s862 + $0xc] sm:$0xf]
        %v867 = vld [vmem:[%s862 + $0x10] sm:$0xf]
        %v868 = vld [vmem:[%s862 + $0x14] sm:$0xf]
        %v869 = vld [vmem:[%s862 + $0x18] sm:$0xf]
        %v870 = vld [vmem:[%s862 + $0x1c] sm:$0xf]
        %v871 = vld [vmem:[%s862 + $0x20] sm:$0xf]
        %v872 = vld [vmem:[%s862 + $0x24] sm:$0xf]
        %v873 = vld [vmem:[%s862 + $0x28] sm:$0xf]
        %v874 = vld [vmem:[%s862 + $0x2c] sm:$0xf]
        %v875 = vld [vmem:[%s862 + $0x30] sm:$0xf]
        %v876 = vld [vmem:[%s862 + $0x34] sm:$0xf]
        %v877 = vld [vmem:[%s862 + $0x38] sm:$0xf]
        %v878 = vld [vmem:[%s862 + $0x3c] sm:$0xf]
        %v887 = vunpack.c.l.b16 %v675
        %v888 = vunpack.c.l.b16 %v676
        %v889 = vunpack.c.l.b16 %v677
        %v890 = vunpack.c.l.b16 %v678
        %v891 = vunpack.c.l.b16 %v679
        %v892 = vunpack.c.l.b16 %v680
        %v893 = vunpack.c.l.b16 %v681
        %v894 = vunpack.c.l.b16 %v682
        %v895 = vpack.c.b16 %v888, %v887
        %v896 = vpack.c.b16 %v890, %v889
        %v897 = vpack.c.b16 %v892, %v891
        %v898 = vpack.c.b16 %v894, %v893
        %v919 = vunpack.c.l.b16 %v863
        %v920 = vunpack.c.l.b16 %v864
        %v921 = vunpack.c.l.b16 %v865
        %v922 = vunpack.c.l.b16 %v866
        %v923 = vunpack.c.l.b16 %v867
        %v924 = vunpack.c.l.b16 %v868
        %v925 = vunpack.c.l.b16 %v869
        %v926 = vunpack.c.l.b16 %v870
        %v927 = vunpack.c.l.b16 %v871
        %v928 = vunpack.c.l.b16 %v872
        %v929 = vunpack.c.l.b16 %v873
        %v930 = vunpack.c.l.b16 %v874
        %v931 = vunpack.c.l.b16 %v875
        %v932 = vunpack.c.l.b16 %v876
        %v933 = vunpack.c.l.b16 %v877
        %v934 = vunpack.c.l.b16 %v878
        %v935 = vpack.c.b16 %v920, %v919
        %v936 = vpack.c.b16 %v922, %v921
        %v937 = vpack.c.b16 %v924, %v923
        %v938 = vpack.c.b16 %v926, %v925
        %v939 = vpack.c.b16 %v928, %v927
        %v940 = vpack.c.b16 %v930, %v929
        %v941 = vpack.c.b16 %v932, %v931
        %v942 = vpack.c.b16 %v934, %v933
        %951 = vmatprep.subr.bf16.mxu0 0
        %952 = vmatpush1.bf16.msra.mxu0 %v935
        %953 = vmatprep.subr.bf16.mxu0 0
        %954 = vmatpush1.bf16.msra.mxu0 %v936
        %955 = vmatprep.subr.bf16.mxu0 0
        %956 = vmatpush1.bf16.msra.mxu0 %v937
        %957 = vmatprep.subr.bf16.mxu0 0
        %958 = vmatpush1.bf16.msra.mxu0 %v938
        %959 = vmatprep.subr.bf16.mxu0 0
        %960 = vmatpush1.bf16.msra.mxu0 %v939
        %961 = vmatprep.subr.bf16.mxu0 0
        %962 = vmatpush1.bf16.msra.mxu0 %v940
        %963 = vmatprep.subr.bf16.mxu0 0
        %964 = vmatpush1.bf16.msra.mxu0 %v941
        %965 = vmatprep.subr.bf16.mxu0 0
        %966 = vmatpush1.bf16.msra.mxu0 %v942
        %967 = vmatprep.subr.bf16.mxu0 0
        %968 = vmatpush1.bf16.msra.mxu0 0
        %969 = vmatprep.subr.bf16.mxu0 0
        %970 = vmatpush1.bf16.msra.mxu0 0
        %971 = vmatprep.subr.bf16.mxu0 0
        %972 = vmatpush1.bf16.msra.mxu0 0
        %973 = vmatprep.subr.bf16.mxu0 0
        %974 = vmatpush1.bf16.msra.mxu0 0
        %975 = vmatprep.subr.bf16.mxu0 0
        %976 = vmatpush1.bf16.msra.mxu0 0
        %977 = vmatprep.subr.bf16.mxu0 0
        %978 = vmatpush1.bf16.msra.mxu0 0
        %979 = vmatprep.subr.bf16.mxu0 0
        %980 = vmatpush1.bf16.msra.mxu0 0
        %981 = vmatprep.subr.bf16.mxu0 0
        %982 = vmatpush1.bf16.msra.mxu0 0
        %983 = vmatprep.mubr.bf16.mxu0 0
        %984 = vmatmul.mubr.bf16.gmra.mrb[0].mxu0 %v895
        %v985 = vpop.f32.mrb[0].mxu0
        %v986 = vadd.f32 0.0, %v985
        %v987 = vpop.f32.mrb[0].mxu0
        %v988 = vpop.f32.mrb[0].mxu0
        %v989 = vadd.f32 0.0, %v988
        %v990 = vpop.f32.mrb[0].mxu0
        %991 = vmatprep.mubr.bf16.mxu0 0
        %992 = vmatmul.mubr.bf16.gmra.mrb[0].mxu0 %v896
        %v993 = vpop.f32.mrb[0].mxu0
        %v994 = vadd.f32 0.0, %v993
        %v995 = vpop.f32.mrb[0].mxu0
        %v996 = vpop.f32.mrb[0].mxu0
        %v997 = vadd.f32 0.0, %v996
        %v998 = vpop.f32.mrb[0].mxu0
        %999 = vmatprep.mubr.bf16.mxu0 0
        %1000 = vmatmul.mubr.bf16.gmra.mrb[0].mxu0 %v897
        %v1001 = vpop.f32.mrb[0].mxu0
        %v1002 = vadd.f32 0.0, %v1001
        %v1003 = vpop.f32.mrb[0].mxu0
        %v1004 = vpop.f32.mrb[0].mxu0
        %v1005 = vadd.f32 0.0, %v1004
        %v1006 = vpop.f32.mrb[0].mxu0
        %1007 = vmatprep.mubr.bf16.mxu0 0
        %1008 = vmatmul.mubr.bf16.gmra.mrb[0].mxu0 %v898
        %v1009 = vpop.f32.mrb[0].mxu0
        %v1010 = vadd.f32 0.0, %v1009
        %v1011 = vpop.f32.mrb[0].mxu0
        %v1012 = vpop.f32.mrb[0].mxu0
        %v1013 = vadd.f32 0.0, %v1012
        %v1014 = vpop.f32.mrb[0].mxu0
        %1015 = vdwg.mxu0
        %v1024 = vunpack.c.l.b16 %v659
        %v1025 = vunpack.c.l.b16 %v661
        %v1026 = vunpack.c.l.b16 %v663
        %v1027 = vunpack.c.l.b16 %v665
        %v1028 = vunpack.c.l.b16 %v667
        %v1029 = vunpack.c.l.b16 %v669
        %v1030 = vunpack.c.l.b16 %v671
        %v1031 = vunpack.c.l.b16 %v673
        %v1032 = vpack.c.b16 %v1025, %v1024
        %v1033 = vpack.c.b16 %v1027, %v1026
        %v1034 = vpack.c.b16 %v1029, %v1028
        %v1035 = vpack.c.b16 %v1031, %v1030
        %v1056 = vunpack.c.l.b16 %v846
        %v1057 = vunpack.c.l.b16 %v847
        %v1058 = vunpack.c.l.b16 %v848
        %v1059 = vunpack.c.l.b16 %v849
        %v1060 = vunpack.c.l.b16 %v850
        %v1061 = vunpack.c.l.b16 %v851
        %v1062 = vunpack.c.l.b16 %v852
        %v1063 = vunpack.c.l.b16 %v853
        %v1064 = vunpack.c.l.b16 %v854
        %v1065 = vunpack.c.l.b16 %v855
        %v1066 = vunpack.c.l.b16 %v856
        %v1067 = vunpack.c.l.b16 %v857
        %v1068 = vunpack.c.l.b16 %v858
        %v1069 = vunpack.c.l.b16 %v859
        %v1070 = vunpack.c.l.b16 %v860
        %v1071 = vunpack.c.l.b16 %v861
        %v1072 = vpack.c.b16 %v1057, %v1056
        %v1073 = vpack.c.b16 %v1059, %v1058
        %v1074 = vpack.c.b16 %v1061, %v1060
        %v1075 = vpack.c.b16 %v1063, %v1062
        %v1076 = vpack.c.b16 %v1065, %v1064
        %v1077 = vpack.c.b16 %v1067, %v1066
        %v1078 = vpack.c.b16 %v1069, %v1068
        %v1079 = vpack.c.b16 %v1071, %v1070
        %1088 = vmatprep.subr.bf16.mxu0 0
        %1089 = vmatpush1.bf16.msra.mxu0 %v1072
        %1090 = vmatprep.subr.bf16.mxu0 0
        %1091 = vmatpush1.bf16.msra.mxu0 %v1073
        %1092 = vmatprep.subr.bf16.mxu0 0
        %1093 = vmatpush1.bf16.msra.mxu0 %v1074
        %1094 = vmatprep.subr.bf16.mxu0 0
        %1095 = vmatpush1.bf16.msra.mxu0 %v1075
        %1096 = vmatprep.subr.bf16.mxu0 0
        %1097 = vmatpush1.bf16.msra.mxu0 %v1076
        %1098 = vmatprep.subr.bf16.mxu0 0
        %1099 = vmatpush1.bf16.msra.mxu0 %v1077
        %1100 = vmatprep.subr.bf16.mxu0 0
        %1101 = vmatpush1.bf16.msra.mxu0 %v1078
        %1102 = vmatprep.subr.bf16.mxu0 0
        %1103 = vmatpush1.bf16.msra.mxu0 %v1079
        %1104 = vmatprep.subr.bf16.mxu0 0
        %1105 = vmatpush1.bf16.msra.mxu0 0
        %1106 = vmatprep.subr.bf16.mxu0 0
        %1107 = vmatpush1.bf16.msra.mxu0 0
        %1108 = vmatprep.subr.bf16.mxu0 0
        %1109 = vmatpush1.bf16.msra.mxu0 0
        %1110 = vmatprep.subr.bf16.mxu0 0
        %1111 = vmatpush1.bf16.msra.mxu0 0
        %1112 = vmatprep.subr.bf16.mxu0 0
        %1113 = vmatpush1.bf16.msra.mxu0 0
        %1114 = vmatprep.subr.bf16.mxu0 0
        %1115 = vmatpush1.bf16.msra.mxu0 0
        %1116 = vmatprep.subr.bf16.mxu0 0
        %1117 = vmatpush1.bf16.msra.mxu0 0
        %1118 = vmatprep.subr.bf16.mxu0 0
        %1119 = vmatpush1.bf16.msra.mxu0 0
        %1120 = vmatprep.mubr.bf16.mxu0 0
        %1121 = vmatmul.mubr.bf16.gmra.mrb[0].mxu0 %v1032
        %v1122 = vpop.f32.mrb[0].mxu0
        %v1123 = vadd.f32 %v986, %v1122
        %v1124 = vpop.f32.mrb[0].mxu0
        %v1125 = vpop.f32.mrb[0].mxu0
        %v1126 = vadd.f32 %v989, %v1125
        %v1127 = vpop.f32.mrb[0].mxu0
        %1128 = vmatprep.mubr.bf16.mxu0 0
        %1129 = vmatmul.mubr.bf16.gmra.mrb[0].mxu0 %v1033
        %v1130 = vpop.f32.mrb[0].mxu0
        %v1131 = vadd.f32 %v994, %v1130
        %v1132 = vpop.f32.mrb[0].mxu0
        %v1133 = vpop.f32.mrb[0].mxu0
        %v1134 = vadd.f32 %v997, %v1133
        %v1135 = vpop.f32.mrb[0].mxu0
        %1136 = vmatprep.mubr.bf16.mxu0 0
        %1137 = vmatmul.mubr.bf16.gmra.mrb[0].mxu0 %v1034
        %v1138 = vpop.f32.mrb[0].mxu0
        %v1139 = vadd.f32 %v1002, %v1138
        %v1140 = vpop.f32.mrb[0].mxu0
        %v1141 = vpop.f32.mrb[0].mxu0
        %v1142 = vadd.f32 %v1005, %v1141
        %v1143 = vpop.f32.mrb[0].mxu0
        %1144 = vmatprep.mubr.bf16.mxu0 0
        %1145 = vmatmul.mubr.bf16.gmra.mrb[0].mxu0 %v1035
        %v1146 = vpop.f32.mrb[0].mxu0
        %v1147 = vadd.f32 %v1010, %v1146
        %v1148 = vpop.f32.mrb[0].mxu0
        %v1149 = vpop.f32.mrb[0].mxu0
        %v1150 = vadd.f32 %v1013, %v1149
        %v1151 = vpop.f32.mrb[0].mxu0
        %1152 = vdwg.mxu0
        %s1153 = scalar_lea.vmem %s6, 128
        %v1154 = vld [vmem:[%s1153] sm:$0xf]
        %v1155 = vld [vmem:[%s1153 + $0x4] sm:$0xf]
        %v1156 = vld [vmem:[%s1153 + $0x8] sm:$0xf]
        %v1157 = vld [vmem:[%s1153 + $0xc] sm:$0xf]
        %v1158 = vld [vmem:[%s1153 + $0x10] sm:$0xf]
        %v1159 = vld [vmem:[%s1153 + $0x14] sm:$0xf]
        %v1160 = vld [vmem:[%s1153 + $0x18] sm:$0xf]
        %v1161 = vld [vmem:[%s1153 + $0x1c] sm:$0xf]
        %v1162 = vld [vmem:[%s1153 + $0x20] sm:$0xf]
        %v1163 = vld [vmem:[%s1153 + $0x24] sm:$0xf]
        %v1164 = vld [vmem:[%s1153 + $0x28] sm:$0xf]
        %v1165 = vld [vmem:[%s1153 + $0x2c] sm:$0xf]
        %v1166 = vld [vmem:[%s1153 + $0x30] sm:$0xf]
        %v1167 = vld [vmem:[%s1153 + $0x34] sm:$0xf]
        %v1168 = vld [vmem:[%s1153 + $0x38] sm:$0xf]
        %v1169 = vld [vmem:[%s1153 + $0x3c] sm:$0xf]
        %v1170 = vunpack.c.l.b16 %v747
        %v1171 = vunpack.c.l.b16 %v761
        %v1172 = vunpack.c.l.b16 %v775
        %v1173 = vunpack.c.l.b16 %v789
        %v1174 = vunpack.c.l.b16 %v803
        %v1175 = vunpack.c.l.b16 %v817
        %v1176 = vunpack.c.l.b16 %v831
        %v1177 = vunpack.c.l.b16 %v845
        %v1178 = vpack.c.b16 %v1171, %v1170
        %v1179 = vpack.c.b16 %v1173, %v1172
        %v1180 = vpack.c.b16 %v1175, %v1174
        %v1181 = vpack.c.b16 %v1177, %v1176
        %v1202 = vunpack.c.l.b16 %v1154
        %v1203 = vunpack.c.l.b16 %v1155
        %v1204 = vunpack.c.l.b16 %v1156
        %v1205 = vunpack.c.l.b16 %v1157
        %v1206 = vunpack.c.l.b16 %v1158
        %v1207 = vunpack.c.l.b16 %v1159
        %v1208 = vunpack.c.l.b16 %v1160
        %v1209 = vunpack.c.l.b16 %v1161
        %v1210 = vunpack.c.l.b16 %v1162
        %v1211 = vunpack.c.l.b16 %v1163
        %v1212 = vunpack.c.l.b16 %v1164
        %v1213 = vunpack.c.l.b16 %v1165
        %v1214 = vunpack.c.l.b16 %v1166
        %v1215 = vunpack.c.l.b16 %v1167
        %v1216 = vunpack.c.l.b16 %v1168
        %v1217 = vunpack.c.l.b16 %v1169
        %v1218 = vpack.c.b16 %v1203, %v1202
        %v1219 = vpack.c.b16 %v1205, %v1204
        %v1220 = vpack.c.b16 %v1207, %v1206
        %v1221 = vpack.c.b16 %v1209, %v1208
        %v1222 = vpack.c.b16 %v1211, %v1210
        %v1223 = vpack.c.b16 %v1213, %v1212
        %v1224 = vpack.c.b16 %v1215, %v1214
        %v1225 = vpack.c.b16 %v1217, %v1216
        %1234 = vmatprep.subr.bf16.mxu0 0
        %1235 = vmatpush1.bf16.msra.mxu0 %v1218
        %1236 = vmatprep.subr.bf16.mxu0 0
        %1237 = vmatpush1.bf16.msra.mxu0 %v1219
        %1238 = vmatprep.subr.bf16.mxu0 0
        %1239 = vmatpush1.bf16.msra.mxu0 %v1220
        %1240 = vmatprep.subr.bf16.mxu0 0
        %1241 = vmatpush1.bf16.msra.mxu0 %v1221
        %1242 = vmatprep.subr.bf16.mxu0 0
        %1243 = vmatpush1.bf16.msra.mxu0 %v1222
        %1244 = vmatprep.subr.bf16.mxu0 0
        %1245 = vmatpush1.bf16.msra.mxu0 %v1223
        %1246 = vmatprep.subr.bf16.mxu0 0
        %1247 = vmatpush1.bf16.msra.mxu0 %v1224
        %1248 = vmatprep.subr.bf16.mxu0 0
        %1249 = vmatpush1.bf16.msra.mxu0 %v1225
        %1250 = vmatprep.subr.bf16.mxu0 0
        %1251 = vmatpush1.bf16.msra.mxu0 0
        %1252 = vmatprep.subr.bf16.mxu0 0
        %1253 = vmatpush1.bf16.msra.mxu0 0
        %1254 = vmatprep.subr.bf16.mxu0 0
        %1255 = vmatpush1.bf16.msra.mxu0 0
        %1256 = vmatprep.subr.bf16.mxu0 0
        %1257 = vmatpush1.bf16.msra.mxu0 0
        %1258 = vmatprep.subr.bf16.mxu0 0
        %1259 = vmatpush1.bf16.msra.mxu0 0
        %1260 = vmatprep.subr.bf16.mxu0 0
        %1261 = vmatpush1.bf16.msra.mxu0 0
        %1262 = vmatprep.subr.bf16.mxu0 0
        %1263 = vmatpush1.bf16.msra.mxu0 0
        %1264 = vmatprep.subr.bf16.mxu0 0
        %1265 = vmatpush1.bf16.msra.mxu0 0
        %1266 = vmatprep.mubr.bf16.mxu0 0
        %1267 = vmatmul.mubr.bf16.gmra.mrb[0].mxu0 %v1178
        %v1268 = vpop.f32.mrb[0].mxu0
        %v1269 = vadd.f32 0.0, %v1268
        %v1270 = vpop.f32.mrb[0].mxu0
        %v1271 = vpop.f32.mrb[0].mxu0
        %v1272 = vadd.f32 0.0, %v1271
        %v1273 = vpop.f32.mrb[0].mxu0
        %1274 = vmatprep.mubr.bf16.mxu0 0
        %1275 = vmatmul.mubr.bf16.gmra.mrb[0].mxu0 %v1179
        %v1276 = vpop.f32.mrb[0].mxu0
        %v1277 = vadd.f32 0.0, %v1276
        %v1278 = vpop.f32.mrb[0].mxu0
        %v1279 = vpop.f32.mrb[0].mxu0
        %v1280 = vadd.f32 0.0, %v1279
        %v1281 = vpop.f32.mrb[0].mxu0
        %1282 = vmatprep.mubr.bf16.mxu0 0
        %1283 = vmatmul.mubr.bf16.gmra.mrb[0].mxu0 %v1180
        %v1284 = vpop.f32.mrb[0].mxu0
        %v1285 = vadd.f32 0.0, %v1284
        %v1286 = vpop.f32.mrb[0].mxu0
        %v1287 = vpop.f32.mrb[0].mxu0
        %v1288 = vadd.f32 0.0, %v1287
        %v1289 = vpop.f32.mrb[0].mxu0
        %1290 = vmatprep.mubr.bf16.mxu0 0
        %1291 = vmatmul.mubr.bf16.gmra.mrb[0].mxu0 %v1181
        %v1292 = vpop.f32.mrb[0].mxu0
        %v1293 = vadd.f32 0.0, %v1292
        %v1294 = vpop.f32.mrb[0].mxu0
        %v1295 = vpop.f32.mrb[0].mxu0
        %v1296 = vadd.f32 0.0, %v1295
        %v1297 = vpop.f32.mrb[0].mxu0
        %1298 = vdwg.mxu0
        %v1299 = vadd.f32 %v1123, %v1269
        %v1300 = vadd.f32 %v1126, %v1272
        %v1301 = vadd.f32 %v1131, %v1277
        %v1302 = vadd.f32 %v1134, %v1280
        %v1303 = vadd.f32 %v1139, %v1285
        %v1304 = vadd.f32 %v1142, %v1288
        %v1305 = vadd.f32 %v1147, %v1293
        %v1306 = vadd.f32 %v1150, %v1296
        %v1308 = vshrl.u32 %v683, 16
        %v1310 = vrot.slane %v1308, 4
        %v1311 = vshll.u32 %v683, 16
        %v1313 = vrot.slane %v1311, 5
        %v1314 = vor.u32 %v1310, %v1313
        %v1315 = vrot.slane %v1314, 4
        %v1317 = vshll.u32 %v684, 16
        %v1319 = vrot.slane %v1317, 5
        %v1320 = vsel %vm733, %v1315, %v1319
        %v1322 = vshrl.u32 %v685, 16
        %v1324 = vrot.slane %v1322, 4
        %v1325 = vshll.u32 %v685, 16
        %v1327 = vrot.slane %v1325, 5
        %v1328 = vor.u32 %v1324, %v1327
        %v1329 = vrot.slane %v1328, 4
        %v1331 = vshll.u32 %v686, 16
        %v1333 = vrot.slane %v1331, 5
        %v1334 = vsel %vm733, %v1329, %v1333
        %v1336 = vshrl.u32 %v687, 16
        %v1338 = vrot.slane %v1336, 4
        %v1339 = vshll.u32 %v687, 16
        %v1341 = vrot.slane %v1339, 5
        %v1342 = vor.u32 %v1338, %v1341
        %v1343 = vrot.slane %v1342, 4
        %v1345 = vshll.u32 %v688, 16
        %v1347 = vrot.slane %v1345, 5
        %v1348 = vsel %vm733, %v1343, %v1347
        %v1350 = vshrl.u32 %v689, 16
        %v1352 = vrot.slane %v1350, 4
        %v1353 = vshll.u32 %v689, 16
        %v1355 = vrot.slane %v1353, 5
        %v1356 = vor.u32 %v1352, %v1355
        %v1357 = vrot.slane %v1356, 4
        %v1359 = vshll.u32 %v690, 16
        %v1361 = vrot.slane %v1359, 5
        %v1362 = vsel %vm733, %v1357, %v1361
        %v1364 = vshrl.u32 %v691, 16
        %v1366 = vrot.slane %v1364, 4
        %v1367 = vshll.u32 %v691, 16
        %v1369 = vrot.slane %v1367, 5
        %v1370 = vor.u32 %v1366, %v1369
        %v1371 = vrot.slane %v1370, 4
        %v1373 = vshll.u32 %v692, 16
        %v1375 = vrot.slane %v1373, 5
        %v1376 = vsel %vm733, %v1371, %v1375
        %v1378 = vshrl.u32 %v693, 16
        %v1380 = vrot.slane %v1378, 4
        %v1381 = vshll.u32 %v693, 16
        %v1383 = vrot.slane %v1381, 5
        %v1384 = vor.u32 %v1380, %v1383
        %v1385 = vrot.slane %v1384, 4
        %v1387 = vshll.u32 %v694, 16
        %v1389 = vrot.slane %v1387, 5
        %v1390 = vsel %vm733, %v1385, %v1389
        %v1392 = vshrl.u32 %v695, 16
        %v1394 = vrot.slane %v1392, 4
        %v1395 = vshll.u32 %v695, 16
        %v1397 = vrot.slane %v1395, 5
        %v1398 = vor.u32 %v1394, %v1397
        %v1399 = vrot.slane %v1398, 4
        %v1401 = vshll.u32 %v696, 16
        %v1403 = vrot.slane %v1401, 5
        %v1404 = vsel %vm733, %v1399, %v1403
        %v1406 = vshrl.u32 %v697, 16
        %v1408 = vrot.slane %v1406, 4
        %v1409 = vshll.u32 %v697, 16
        %v1411 = vrot.slane %v1409, 5
        %v1412 = vor.u32 %v1408, %v1411
        %v1413 = vrot.slane %v1412, 4
        %v1415 = vshll.u32 %v698, 16
        %v1417 = vrot.slane %v1415, 5
        %v1418 = vsel %vm733, %v1413, %v1417
        %s1419 = scalar_lea.vmem %s6, 192
        %v1420 = vld [vmem:[%s1419] sm:$0xf]
        %v1421 = vld [vmem:[%s1419 + $0x4] sm:$0xf]
        %v1422 = vld [vmem:[%s1419 + $0x8] sm:$0xf]
        %v1423 = vld [vmem:[%s1419 + $0xc] sm:$0xf]
        %v1424 = vld [vmem:[%s1419 + $0x10] sm:$0xf]
        %v1425 = vld [vmem:[%s1419 + $0x14] sm:$0xf]
        %v1426 = vld [vmem:[%s1419 + $0x18] sm:$0xf]
        %v1427 = vld [vmem:[%s1419 + $0x1c] sm:$0xf]
        %v1428 = vld [vmem:[%s1419 + $0x20] sm:$0xf]
        %v1429 = vld [vmem:[%s1419 + $0x24] sm:$0xf]
        %v1430 = vld [vmem:[%s1419 + $0x28] sm:$0xf]
        %v1431 = vld [vmem:[%s1419 + $0x2c] sm:$0xf]
        %v1432 = vld [vmem:[%s1419 + $0x30] sm:$0xf]
        %v1433 = vld [vmem:[%s1419 + $0x34] sm:$0xf]
        %v1434 = vld [vmem:[%s1419 + $0x38] sm:$0xf]
        %v1435 = vld [vmem:[%s1419 + $0x3c] sm:$0xf]
        %v1444 = vunpack.c.l.b16 %v683
        %v1445 = vunpack.c.l.b16 %v685
        %v1446 = vunpack.c.l.b16 %v687
        %v1447 = vunpack.c.l.b16 %v689
        %v1448 = vunpack.c.l.b16 %v691
        %v1449 = vunpack.c.l.b16 %v693
        %v1450 = vunpack.c.l.b16 %v695
        %v1451 = vunpack.c.l.b16 %v697
        %v1452 = vpack.c.b16 %v1445, %v1444
        %v1453 = vpack.c.b16 %v1447, %v1446
        %v1454 = vpack.c.b16 %v1449, %v1448
        %v1455 = vpack.c.b16 %v1451, %v1450
        %v1476 = vunpack.c.l.b16 %v1420
        %v1477 = vunpack.c.l.b16 %v1421
        %v1478 = vunpack.c.l.b16 %v1422
        %v1479 = vunpack.c.l.b16 %v1423
        %v1480 = vunpack.c.l.b16 %v1424
        %v1481 = vunpack.c.l.b16 %v1425
        %v1482 = vunpack.c.l.b16 %v1426
        %v1483 = vunpack.c.l.b16 %v1427
        %v1484 = vunpack.c.l.b16 %v1428
        %v1485 = vunpack.c.l.b16 %v1429
        %v1486 = vunpack.c.l.b16 %v1430
        %v1487 = vunpack.c.l.b16 %v1431
        %v1488 = vunpack.c.l.b16 %v1432
        %v1489 = vunpack.c.l.b16 %v1433
        %v1490 = vunpack.c.l.b16 %v1434
        %v1491 = vunpack.c.l.b16 %v1435
        %v1492 = vpack.c.b16 %v1477, %v1476
        %v1493 = vpack.c.b16 %v1479, %v1478
        %v1494 = vpack.c.b16 %v1481, %v1480
        %v1495 = vpack.c.b16 %v1483, %v1482
        %v1496 = vpack.c.b16 %v1485, %v1484
        %v1497 = vpack.c.b16 %v1487, %v1486
        %v1498 = vpack.c.b16 %v1489, %v1488
        %v1499 = vpack.c.b16 %v1491, %v1490
        %1508 = vmatprep.subr.bf16.mxu0 0
        %1509 = vmatpush1.bf16.msra.mxu0 %v1492
        %1510 = vmatprep.subr.bf16.mxu0 0
        %1511 = vmatpush1.bf16.msra.mxu0 %v1493
        %1512 = vmatprep.subr.bf16.mxu0 0
        %1513 = vmatpush1.bf16.msra.mxu0 %v1494
        %1514 = vmatprep.subr.bf16.mxu0 0
        %1515 = vmatpush1.bf16.msra.mxu0 %v1495
        %1516 = vmatprep.subr.bf16.mxu0 0
        %1517 = vmatpush1.bf16.msra.mxu0 %v1496
        %1518 = vmatprep.subr.bf16.mxu0 0
        %1519 = vmatpush1.bf16.msra.mxu0 %v1497
        %1520 = vmatprep.subr.bf16.mxu0 0
        %1521 = vmatpush1.bf16.msra.mxu0 %v1498
        %1522 = vmatprep.subr.bf16.mxu0 0
        %1523 = vmatpush1.bf16.msra.mxu0 %v1499
        %1524 = vmatprep.subr.bf16.mxu0 0
        %1525 = vmatpush1.bf16.msra.mxu0 0
        %1526 = vmatprep.subr.bf16.mxu0 0
        %1527 = vmatpush1.bf16.msra.mxu0 0
        %1528 = vmatprep.subr.bf16.mxu0 0
        %1529 = vmatpush1.bf16.msra.mxu0 0
        %1530 = vmatprep.subr.bf16.mxu0 0
        %1531 = vmatpush1.bf16.msra.mxu0 0
        %1532 = vmatprep.subr.bf16.mxu0 0
        %1533 = vmatpush1.bf16.msra.mxu0 0
        %1534 = vmatprep.subr.bf16.mxu0 0
        %1535 = vmatpush1.bf16.msra.mxu0 0
        %1536 = vmatprep.subr.bf16.mxu0 0
        %1537 = vmatpush1.bf16.msra.mxu0 0
        %1538 = vmatprep.subr.bf16.mxu0 0
        %1539 = vmatpush1.bf16.msra.mxu0 0
        %1540 = vmatprep.mubr.bf16.mxu0 0
        %1541 = vmatmul.mubr.bf16.gmra.mrb[0].mxu0 %v1452
        %v1542 = vpop.f32.mrb[0].mxu0
        %v1543 = vadd.f32 0.0, %v1542
        %v1544 = vpop.f32.mrb[0].mxu0
        %v1545 = vpop.f32.mrb[0].mxu0
        %v1546 = vadd.f32 0.0, %v1545
        %v1547 = vpop.f32.mrb[0].mxu0
        %1548 = vmatprep.mubr.bf16.mxu0 0
        %1549 = vmatmul.mubr.bf16.gmra.mrb[0].mxu0 %v1453
        %v1550 = vpop.f32.mrb[0].mxu0
        %v1551 = vadd.f32 0.0, %v1550
        %v1552 = vpop.f32.mrb[0].mxu0
        %v1553 = vpop.f32.mrb[0].mxu0
        %v1554 = vadd.f32 0.0, %v1553
        %v1555 = vpop.f32.mrb[0].mxu0
        %1556 = vmatprep.mubr.bf16.mxu0 0
        %1557 = vmatmul.mubr.bf16.gmra.mrb[0].mxu0 %v1454
        %v1558 = vpop.f32.mrb[0].mxu0
        %v1559 = vadd.f32 0.0, %v1558
        %v1560 = vpop.f32.mrb[0].mxu0
        %v1561 = vpop.f32.mrb[0].mxu0
        %v1562 = vadd.f32 0.0, %v1561
        %v1563 = vpop.f32.mrb[0].mxu0
        %1564 = vmatprep.mubr.bf16.mxu0 0
        %1565 = vmatmul.mubr.bf16.gmra.mrb[0].mxu0 %v1455
        %v1566 = vpop.f32.mrb[0].mxu0
        %v1567 = vadd.f32 0.0, %v1566
        %v1568 = vpop.f32.mrb[0].mxu0
        %v1569 = vpop.f32.mrb[0].mxu0
        %v1570 = vadd.f32 0.0, %v1569
        %v1571 = vpop.f32.mrb[0].mxu0
        %1572 = vdwg.mxu0
        %v1573 = vadd.f32 %v1299, %v1543
        %v1574 = vadd.f32 %v1300, %v1546
        %v1575 = vadd.f32 %v1301, %v1551
        %v1576 = vadd.f32 %v1302, %v1554
        %v1577 = vadd.f32 %v1303, %v1559
        %v1578 = vadd.f32 %v1304, %v1562
        %v1579 = vadd.f32 %v1305, %v1567
        %v1580 = vadd.f32 %v1306, %v1570
        %s1581 = scalar_lea.vmem %s6, 256
        %v1582 = vld [vmem:[%s1581] sm:$0xf]
        %v1583 = vld [vmem:[%s1581 + $0x4] sm:$0xf]
        %v1584 = vld [vmem:[%s1581 + $0x8] sm:$0xf]
        %v1585 = vld [vmem:[%s1581 + $0xc] sm:$0xf]
        %v1586 = vld [vmem:[%s1581 + $0x10] sm:$0xf]
        %v1587 = vld [vmem:[%s1581 + $0x14] sm:$0xf]
        %v1588 = vld [vmem:[%s1581 + $0x18] sm:$0xf]
        %v1589 = vld [vmem:[%s1581 + $0x1c] sm:$0xf]
        %v1590 = vld [vmem:[%s1581 + $0x20] sm:$0xf]
        %v1591 = vld [vmem:[%s1581 + $0x24] sm:$0xf]
        %v1592 = vld [vmem:[%s1581 + $0x28] sm:$0xf]
        %v1593 = vld [vmem:[%s1581 + $0x2c] sm:$0xf]
        %v1594 = vld [vmem:[%s1581 + $0x30] sm:$0xf]
        %v1595 = vld [vmem:[%s1581 + $0x34] sm:$0xf]
        %v1596 = vld [vmem:[%s1581 + $0x38] sm:$0xf]
        %v1597 = vld [vmem:[%s1581 + $0x3c] sm:$0xf]
        %v1606 = vunpack.c.l.b16 %v699
        %v1607 = vunpack.c.l.b16 %v700
        %v1608 = vunpack.c.l.b16 %v701
        %v1609 = vunpack.c.l.b16 %v702
        %v1610 = vunpack.c.l.b16 %v703
        %v1611 = vunpack.c.l.b16 %v704
        %v1612 = vunpack.c.l.b16 %v705
        %v1613 = vunpack.c.l.b16 %v706
        %v1614 = vpack.c.b16 %v1607, %v1606
        %v1615 = vpack.c.b16 %v1609, %v1608
        %v1616 = vpack.c.b16 %v1611, %v1610
        %v1617 = vpack.c.b16 %v1613, %v1612
        %v1638 = vunpack.c.l.b16 %v1582
        %v1639 = vunpack.c.l.b16 %v1583
        %v1640 = vunpack.c.l.b16 %v1584
        %v1641 = vunpack.c.l.b16 %v1585
        %v1642 = vunpack.c.l.b16 %v1586
        %v1643 = vunpack.c.l.b16 %v1587
        %v1644 = vunpack.c.l.b16 %v1588
        %v1645 = vunpack.c.l.b16 %v1589
        %v1646 = vunpack.c.l.b16 %v1590
        %v1647 = vunpack.c.l.b16 %v1591
        %v1648 = vunpack.c.l.b16 %v1592
        %v1649 = vunpack.c.l.b16 %v1593
        %v1650 = vunpack.c.l.b16 %v1594
        %v1651 = vunpack.c.l.b16 %v1595
        %v1652 = vunpack.c.l.b16 %v1596
        %v1653 = vunpack.c.l.b16 %v1597
        %v1654 = vpack.c.b16 %v1639, %v1638
        %v1655 = vpack.c.b16 %v1641, %v1640
        %v1656 = vpack.c.b16 %v1643, %v1642
        %v1657 = vpack.c.b16 %v1645, %v1644
        %v1658 = vpack.c.b16 %v1647, %v1646
        %v1659 = vpack.c.b16 %v1649, %v1648
        %v1660 = vpack.c.b16 %v1651, %v1650
        %v1661 = vpack.c.b16 %v1653, %v1652
        %1670 = vmatprep.subr.bf16.mxu0 0
        %1671 = vmatpush1.bf16.msra.mxu0 %v1654
        %1672 = vmatprep.subr.bf16.mxu0 0
        %1673 = vmatpush1.bf16.msra.mxu0 %v1655
        %1674 = vmatprep.subr.bf16.mxu0 0
        %1675 = vmatpush1.bf16.msra.mxu0 %v1656
        %1676 = vmatprep.subr.bf16.mxu0 0
        %1677 = vmatpush1.bf16.msra.mxu0 %v1657
        %1678 = vmatprep.subr.bf16.mxu0 0
        %1679 = vmatpush1.bf16.msra.mxu0 %v1658
        %1680 = vmatprep.subr.bf16.mxu0 0
        %1681 = vmatpush1.bf16.msra.mxu0 %v1659
        %1682 = vmatprep.subr.bf16.mxu0 0
        %1683 = vmatpush1.bf16.msra.mxu0 %v1660
        %1684 = vmatprep.subr.bf16.mxu0 0
        %1685 = vmatpush1.bf16.msra.mxu0 %v1661
        %1686 = vmatprep.subr.bf16.mxu0 0
        %1687 = vmatpush1.bf16.msra.mxu0 0
        %1688 = vmatprep.subr.bf16.mxu0 0
        %1689 = vmatpush1.bf16.msra.mxu0 0
        %1690 = vmatprep.subr.bf16.mxu0 0
        %1691 = vmatpush1.bf16.msra.mxu0 0
        %1692 = vmatprep.subr.bf16.mxu0 0
        %1693 = vmatpush1.bf16.msra.mxu0 0
        %1694 = vmatprep.subr.bf16.mxu0 0
        %1695 = vmatpush1.bf16.msra.mxu0 0
        %1696 = vmatprep.subr.bf16.mxu0 0
        %1697 = vmatpush1.bf16.msra.mxu0 0
        %1698 = vmatprep.subr.bf16.mxu0 0
        %1699 = vmatpush1.bf16.msra.mxu0 0
        %1700 = vmatprep.subr.bf16.mxu0 0
        %1701 = vmatpush1.bf16.msra.mxu0 0
        %1702 = vmatprep.mubr.bf16.mxu0 0
        %1703 = vmatmul.mubr.bf16.gmra.mrb[0].mxu0 %v1614
        %v1704 = vpop.f32.mrb[0].mxu0
        %v1705 = vadd.f32 0.0, %v1704
        %v1706 = vpop.f32.mrb[0].mxu0
        %v1707 = vpop.f32.mrb[0].mxu0
        %v1708 = vadd.f32 0.0, %v1707
        %v1709 = vpop.f32.mrb[0].mxu0
        %1710 = vmatprep.mubr.bf16.mxu0 0
        %1711 = vmatmul.mubr.bf16.gmra.mrb[0].mxu0 %v1615
        %v1712 = vpop.f32.mrb[0].mxu0
        %v1713 = vadd.f32 0.0, %v1712
        %v1714 = vpop.f32.mrb[0].mxu0
        %v1715 = vpop.f32.mrb[0].mxu0
        %v1716 = vadd.f32 0.0, %v1715
        %v1717 = vpop.f32.mrb[0].mxu0
        %1718 = vmatprep.mubr.bf16.mxu0 0
        %1719 = vmatmul.mubr.bf16.gmra.mrb[0].mxu0 %v1616
        %v1720 = vpop.f32.mrb[0].mxu0
        %v1721 = vadd.f32 0.0, %v1720
        %v1722 = vpop.f32.mrb[0].mxu0
        %v1723 = vpop.f32.mrb[0].mxu0
        %v1724 = vadd.f32 0.0, %v1723
        %v1725 = vpop.f32.mrb[0].mxu0
        %1726 = vmatprep.mubr.bf16.mxu0 0
        %1727 = vmatmul.mubr.bf16.gmra.mrb[0].mxu0 %v1617
        %v1728 = vpop.f32.mrb[0].mxu0
        %v1729 = vadd.f32 0.0, %v1728
        %v1730 = vpop.f32.mrb[0].mxu0
        %v1731 = vpop.f32.mrb[0].mxu0
        %v1732 = vadd.f32 0.0, %v1731
        %v1733 = vpop.f32.mrb[0].mxu0
        %1734 = vdwg.mxu0
        %v1735 = vadd.f32 %v1573, %v1705
        %v1736 = vadd.f32 %v1574, %v1708
        %v1737 = vadd.f32 %v1575, %v1713
        %v1738 = vadd.f32 %v1576, %v1716
        %v1739 = vadd.f32 %v1577, %v1721
        %v1740 = vadd.f32 %v1578, %v1724
        %v1741 = vadd.f32 %v1579, %v1729
        %v1742 = vadd.f32 %v1580, %v1732
        %s1743 = scalar_lea.vmem %s6, 320
        %v1744 = vld [vmem:[%s1743] sm:$0xf]
        %v1745 = vld [vmem:[%s1743 + $0x4] sm:$0xf]
        %v1746 = vld [vmem:[%s1743 + $0x8] sm:$0xf]
        %v1747 = vld [vmem:[%s1743 + $0xc] sm:$0xf]
        %v1748 = vld [vmem:[%s1743 + $0x10] sm:$0xf]
        %v1749 = vld [vmem:[%s1743 + $0x14] sm:$0xf]
        %v1750 = vld [vmem:[%s1743 + $0x18] sm:$0xf]
        %v1751 = vld [vmem:[%s1743 + $0x1c] sm:$0xf]
        %v1752 = vld [vmem:[%s1743 + $0x20] sm:$0xf]
        %v1753 = vld [vmem:[%s1743 + $0x24] sm:$0xf]
        %v1754 = vld [vmem:[%s1743 + $0x28] sm:$0xf]
        %v1755 = vld [vmem:[%s1743 + $0x2c] sm:$0xf]
        %v1756 = vld [vmem:[%s1743 + $0x30] sm:$0xf]
        %v1757 = vld [vmem:[%s1743 + $0x34] sm:$0xf]
        %v1758 = vld [vmem:[%s1743 + $0x38] sm:$0xf]
        %v1759 = vld [vmem:[%s1743 + $0x3c] sm:$0xf]
        %v1760 = vunpack.c.l.b16 %v1320
        %v1761 = vunpack.c.l.b16 %v1334
        %v1762 = vunpack.c.l.b16 %v1348
        %v1763 = vunpack.c.l.b16 %v1362
        %v1764 = vunpack.c.l.b16 %v1376
        %v1765 = vunpack.c.l.b16 %v1390
        %v1766 = vunpack.c.l.b16 %v1404
        %v1767 = vunpack.c.l.b16 %v1418
        %v1768 = vpack.c.b16 %v1761, %v1760
        %v1769 = vpack.c.b16 %v1763, %v1762
        %v1770 = vpack.c.b16 %v1765, %v1764
        %v1771 = vpack.c.b16 %v1767, %v1766
        %v1792 = vunpack.c.l.b16 %v1744
        %v1793 = vunpack.c.l.b16 %v1745
        %v1794 = vunpack.c.l.b16 %v1746
        %v1795 = vunpack.c.l.b16 %v1747
        %v1796 = vunpack.c.l.b16 %v1748
        %v1797 = vunpack.c.l.b16 %v1749
        %v1798 = vunpack.c.l.b16 %v1750
        %v1799 = vunpack.c.l.b16 %v1751
        %v1800 = vunpack.c.l.b16 %v1752
        %v1801 = vunpack.c.l.b16 %v1753
        %v1802 = vunpack.c.l.b16 %v1754
        %v1803 = vunpack.c.l.b16 %v1755
        %v1804 = vunpack.c.l.b16 %v1756
        %v1805 = vunpack.c.l.b16 %v1757
        %v1806 = vunpack.c.l.b16 %v1758
        %v1807 = vunpack.c.l.b16 %v1759
        %v1808 = vpack.c.b16 %v1793, %v1792
        %v1809 = vpack.c.b16 %v1795, %v1794
        %v1810 = vpack.c.b16 %v1797, %v1796
        %v1811 = vpack.c.b16 %v1799, %v1798
        %v1812 = vpack.c.b16 %v1801, %v1800
        %v1813 = vpack.c.b16 %v1803, %v1802
        %v1814 = vpack.c.b16 %v1805, %v1804
        %v1815 = vpack.c.b16 %v1807, %v1806
        %1824 = vmatprep.subr.bf16.mxu0 0
        %1825 = vmatpush1.bf16.msra.mxu0 %v1808
        %1826 = vmatprep.subr.bf16.mxu0 0
        %1827 = vmatpush1.bf16.msra.mxu0 %v1809
        %1828 = vmatprep.subr.bf16.mxu0 0
        %1829 = vmatpush1.bf16.msra.mxu0 %v1810
        %1830 = vmatprep.subr.bf16.mxu0 0
        %1831 = vmatpush1.bf16.msra.mxu0 %v1811
        %1832 = vmatprep.subr.bf16.mxu0 0
        %1833 = vmatpush1.bf16.msra.mxu0 %v1812
        %1834 = vmatprep.subr.bf16.mxu0 0
        %1835 = vmatpush1.bf16.msra.mxu0 %v1813
        %1836 = vmatprep.subr.bf16.mxu0 0
        %1837 = vmatpush1.bf16.msra.mxu0 %v1814
        %1838 = vmatprep.subr.bf16.mxu0 0
        %1839 = vmatpush1.bf16.msra.mxu0 %v1815
        %1840 = vmatprep.subr.bf16.mxu0 0
        %1841 = vmatpush1.bf16.msra.mxu0 0
        %1842 = vmatprep.subr.bf16.mxu0 0
        %1843 = vmatpush1.bf16.msra.mxu0 0
        %1844 = vmatprep.subr.bf16.mxu0 0
        %1845 = vmatpush1.bf16.msra.mxu0 0
        %1846 = vmatprep.subr.bf16.mxu0 0
        %1847 = vmatpush1.bf16.msra.mxu0 0
        %1848 = vmatprep.subr.bf16.mxu0 0
        %1849 = vmatpush1.bf16.msra.mxu0 0
        %1850 = vmatprep.subr.bf16.mxu0 0
        %1851 = vmatpush1.bf16.msra.mxu0 0
        %1852 = vmatprep.subr.bf16.mxu0 0
        %1853 = vmatpush1.bf16.msra.mxu0 0
        %1854 = vmatprep.subr.bf16.mxu0 0
        %1855 = vmatpush1.bf16.msra.mxu0 0
        %1856 = vmatprep.mubr.bf16.mxu0 0
        %1857 = vmatmul.mubr.bf16.gmra.mrb[0].mxu0 %v1768
        %v1858 = vpop.f32.mrb[0].mxu0
        %v1859 = vadd.f32 0.0, %v1858
        %v1860 = vpop.f32.mrb[0].mxu0
        %v1861 = vpop.f32.mrb[0].mxu0
        %v1862 = vadd.f32 0.0, %v1861
        %v1863 = vpop.f32.mrb[0].mxu0
        %1864 = vmatprep.mubr.bf16.mxu0 0
        %1865 = vmatmul.mubr.bf16.gmra.mrb[0].mxu0 %v1769
        %v1866 = vpop.f32.mrb[0].mxu0
        %v1867 = vadd.f32 0.0, %v1866
        %v1868 = vpop.f32.mrb[0].mxu0
        %v1869 = vpop.f32.mrb[0].mxu0
        %v1870 = vadd.f32 0.0, %v1869
        %v1871 = vpop.f32.mrb[0].mxu0
        %1872 = vmatprep.mubr.bf16.mxu0 0
        %1873 = vmatmul.mubr.bf16.gmra.mrb[0].mxu0 %v1770
        %v1874 = vpop.f32.mrb[0].mxu0
        %v1875 = vadd.f32 0.0, %v1874
        %v1876 = vpop.f32.mrb[0].mxu0
        %v1877 = vpop.f32.mrb[0].mxu0
        %v1878 = vadd.f32 0.0, %v1877
        %v1879 = vpop.f32.mrb[0].mxu0
        %1880 = vmatprep.mubr.bf16.mxu0 0
        %1881 = vmatmul.mubr.bf16.gmra.mrb[0].mxu0 %v1771
        %v1882 = vpop.f32.mrb[0].mxu0
        %v1883 = vadd.f32 0.0, %v1882
        %v1884 = vpop.f32.mrb[0].mxu0
        %v1885 = vpop.f32.mrb[0].mxu0
        %v1886 = vadd.f32 0.0, %v1885
        %v1887 = vpop.f32.mrb[0].mxu0
        %1888 = vdwg.mxu0
        %v1889 = vadd.f32 %v1735, %v1859
        %v1890 = vadd.f32 %v1736, %v1862
        %v1891 = vadd.f32 %v1737, %v1867
        %v1892 = vadd.f32 %v1738, %v1870
        %v1893 = vadd.f32 %v1739, %v1875
        %v1894 = vadd.f32 %v1740, %v1878
        %v1895 = vadd.f32 %v1741, %v1883
        %v1896 = vadd.f32 %v1742, %v1886
        %v1898 = vshrl.u32 %v707, 16
        %v1900 = vrot.slane %v1898, 4
        %v1901 = vshll.u32 %v707, 16
        %v1903 = vrot.slane %v1901, 5
        %v1904 = vor.u32 %v1900, %v1903
        %v1905 = vrot.slane %v1904, 4
        %v1907 = vshll.u32 %v708, 16
        %v1909 = vrot.slane %v1907, 5
        %v1910 = vsel %vm733, %v1905, %v1909
        %v1912 = vshrl.u32 %v709, 16
        %v1914 = vrot.slane %v1912, 4
        %v1915 = vshll.u32 %v709, 16
        %v1917 = vrot.slane %v1915, 5
        %v1918 = vor.u32 %v1914, %v1917
        %v1919 = vrot.slane %v1918, 4
        %v1921 = vshll.u32 %v710, 16
        %v1923 = vrot.slane %v1921, 5
        %v1924 = vsel %vm733, %v1919, %v1923
        %v1926 = vshrl.u32 %v711, 16
        %v1928 = vrot.slane %v1926, 4
        %v1929 = vshll.u32 %v711, 16
        %v1931 = vrot.slane %v1929, 5
        %v1932 = vor.u32 %v1928, %v1931
        %v1933 = vrot.slane %v1932, 4
        %v1935 = vshll.u32 %v712, 16
        %v1937 = vrot.slane %v1935, 5
        %v1938 = vsel %vm733, %v1933, %v1937
        %v1940 = vshrl.u32 %v713, 16
        %v1942 = vrot.slane %v1940, 4
        %v1943 = vshll.u32 %v713, 16
        %v1945 = vrot.slane %v1943, 5
        %v1946 = vor.u32 %v1942, %v1945
        %v1947 = vrot.slane %v1946, 4
        %v1949 = vshll.u32 %v714, 16
        %v1951 = vrot.slane %v1949, 5
        %v1952 = vsel %vm733, %v1947, %v1951
        %v1954 = vshrl.u32 %v715, 16
        %v1956 = vrot.slane %v1954, 4
        %v1957 = vshll.u32 %v715, 16
        %v1959 = vrot.slane %v1957, 5
        %v1960 = vor.u32 %v1956, %v1959
        %v1961 = vrot.slane %v1960, 4
        %v1963 = vshll.u32 %v716, 16
        %v1965 = vrot.slane %v1963, 5
        %v1966 = vsel %vm733, %v1961, %v1965
        %v1968 = vshrl.u32 %v717, 16
        %v1970 = vrot.slane %v1968, 4
        %v1971 = vshll.u32 %v717, 16
        %v1973 = vrot.slane %v1971, 5
        %v1974 = vor.u32 %v1970, %v1973
        %v1975 = vrot.slane %v1974, 4
        %v1977 = vshll.u32 %v718, 16
        %v1979 = vrot.slane %v1977, 5
        %v1980 = vsel %vm733, %v1975, %v1979
        %v1982 = vshrl.u32 %v719, 16
        %v1984 = vrot.slane %v1982, 4
        %v1985 = vshll.u32 %v719, 16
        %v1987 = vrot.slane %v1985, 5
        %v1988 = vor.u32 %v1984, %v1987
        %v1989 = vrot.slane %v1988, 4
        %v1991 = vshll.u32 %v720, 16
        %v1993 = vrot.slane %v1991, 5
        %v1994 = vsel %vm733, %v1989, %v1993
        %v1996 = vshrl.u32 %v721, 16
        %v1998 = vrot.slane %v1996, 4
        %v1999 = vshll.u32 %v721, 16
        %v2001 = vrot.slane %v1999, 5
        %v2002 = vor.u32 %v1998, %v2001
        %v2003 = vrot.slane %v2002, 4
        %v2005 = vshll.u32 %v722, 16
        %v2007 = vrot.slane %v2005, 5
        %v2008 = vsel %vm733, %v2003, %v2007
        %s2009 = scalar_lea.vmem %s6, 384
        %v2010 = vld [vmem:[%s2009] sm:$0xf]
        %v2011 = vld [vmem:[%s2009 + $0x4] sm:$0xf]
        %v2012 = vld [vmem:[%s2009 + $0x8] sm:$0xf]
        %v2013 = vld [vmem:[%s2009 + $0xc] sm:$0xf]
        %v2014 = vld [vmem:[%s2009 + $0x10] sm:$0xf]
        %v2015 = vld [vmem:[%s2009 + $0x14] sm:$0xf]
        %v2016 = vld [vmem:[%s2009 + $0x18] sm:$0xf]
        %v2017 = vld [vmem:[%s2009 + $0x1c] sm:$0xf]
        %v2018 = vld [vmem:[%s2009 + $0x20] sm:$0xf]
        %v2019 = vld [vmem:[%s2009 + $0x24] sm:$0xf]
        %v2020 = vld [vmem:[%s2009 + $0x28] sm:$0xf]
        %v2021 = vld [vmem:[%s2009 + $0x2c] sm:$0xf]
        %v2022 = vld [vmem:[%s2009 + $0x30] sm:$0xf]
        %v2023 = vld [vmem:[%s2009 + $0x34] sm:$0xf]
        %v2024 = vld [vmem:[%s2009 + $0x38] sm:$0xf]
        %v2025 = vld [vmem:[%s2009 + $0x3c] sm:$0xf]
        %v2034 = vunpack.c.l.b16 %v707
        %v2035 = vunpack.c.l.b16 %v709
        %v2036 = vunpack.c.l.b16 %v711
        %v2037 = vunpack.c.l.b16 %v713
        %v2038 = vunpack.c.l.b16 %v715
        %v2039 = vunpack.c.l.b16 %v717
        %v2040 = vunpack.c.l.b16 %v719
        %v2041 = vunpack.c.l.b16 %v721
        %v2042 = vpack.c.b16 %v2035, %v2034
        %v2043 = vpack.c.b16 %v2037, %v2036
        %v2044 = vpack.c.b16 %v2039, %v2038
        %v2045 = vpack.c.b16 %v2041, %v2040
        %v2066 = vunpack.c.l.b16 %v2010
        %v2067 = vunpack.c.l.b16 %v2011
        %v2068 = vunpack.c.l.b16 %v2012
        %v2069 = vunpack.c.l.b16 %v2013
        %v2070 = vunpack.c.l.b16 %v2014
        %v2071 = vunpack.c.l.b16 %v2015
        %v2072 = vunpack.c.l.b16 %v2016
        %v2073 = vunpack.c.l.b16 %v2017
        %v2074 = vunpack.c.l.b16 %v2018
        %v2075 = vunpack.c.l.b16 %v2019
        %v2076 = vunpack.c.l.b16 %v2020
        %v2077 = vunpack.c.l.b16 %v2021
        %v2078 = vunpack.c.l.b16 %v2022
        %v2079 = vunpack.c.l.b16 %v2023
        %v2080 = vunpack.c.l.b16 %v2024
        %v2081 = vunpack.c.l.b16 %v2025
        %v2082 = vpack.c.b16 %v2067, %v2066
        %v2083 = vpack.c.b16 %v2069, %v2068
        %v2084 = vpack.c.b16 %v2071, %v2070
        %v2085 = vpack.c.b16 %v2073, %v2072
        %v2086 = vpack.c.b16 %v2075, %v2074
        %v2087 = vpack.c.b16 %v2077, %v2076
        %v2088 = vpack.c.b16 %v2079, %v2078
        %v2089 = vpack.c.b16 %v2081, %v2080
        %2098 = vmatprep.subr.bf16.mxu0 0
        %2099 = vmatpush1.bf16.msra.mxu0 %v2082
        %2100 = vmatprep.subr.bf16.mxu0 0
        %2101 = vmatpush1.bf16.msra.mxu0 %v2083
        %2102 = vmatprep.subr.bf16.mxu0 0
        %2103 = vmatpush1.bf16.msra.mxu0 %v2084
        %2104 = vmatprep.subr.bf16.mxu0 0
        %2105 = vmatpush1.bf16.msra.mxu0 %v2085
        %2106 = vmatprep.subr.bf16.mxu0 0
        %2107 = vmatpush1.bf16.msra.mxu0 %v2086
        %2108 = vmatprep.subr.bf16.mxu0 0
        %2109 = vmatpush1.bf16.msra.mxu0 %v2087
        %2110 = vmatprep.subr.bf16.mxu0 0
        %2111 = vmatpush1.bf16.msra.mxu0 %v2088
        %2112 = vmatprep.subr.bf16.mxu0 0
        %2113 = vmatpush1.bf16.msra.mxu0 %v2089
        %2114 = vmatprep.subr.bf16.mxu0 0
        %2115 = vmatpush1.bf16.msra.mxu0 0
        %2116 = vmatprep.subr.bf16.mxu0 0
        %2117 = vmatpush1.bf16.msra.mxu0 0
        %2118 = vmatprep.subr.bf16.mxu0 0
        %2119 = vmatpush1.bf16.msra.mxu0 0
        %2120 = vmatprep.subr.bf16.mxu0 0
        %2121 = vmatpush1.bf16.msra.mxu0 0
        %2122 = vmatprep.subr.bf16.mxu0 0
        %2123 = vmatpush1.bf16.msra.mxu0 0
        %2124 = vmatprep.subr.bf16.mxu0 0
        %2125 = vmatpush1.bf16.msra.mxu0 0
        %2126 = vmatprep.subr.bf16.mxu0 0
        %2127 = vmatpush1.bf16.msra.mxu0 0
        %2128 = vmatprep.subr.bf16.mxu0 0
        %2129 = vmatpush1.bf16.msra.mxu0 0
        %2130 = vmatprep.mubr.bf16.mxu0 0
        %2131 = vmatmul.mubr.bf16.gmra.mrb[0].mxu0 %v2042
        %v2132 = vpop.f32.mrb[0].mxu0
        %v2133 = vadd.f32 0.0, %v2132
        %v2134 = vpop.f32.mrb[0].mxu0
        %v2135 = vpop.f32.mrb[0].mxu0
        %v2136 = vadd.f32 0.0, %v2135
        %v2137 = vpop.f32.mrb[0].mxu0
        %2138 = vmatprep.mubr.bf16.mxu0 0
        %2139 = vmatmul.mubr.bf16.gmra.mrb[0].mxu0 %v2043
        %v2140 = vpop.f32.mrb[0].mxu0
        %v2141 = vadd.f32 0.0, %v2140
        %v2142 = vpop.f32.mrb[0].mxu0
        %v2143 = vpop.f32.mrb[0].mxu0
        %v2144 = vadd.f32 0.0, %v2143
        %v2145 = vpop.f32.mrb[0].mxu0
        %2146 = vmatprep.mubr.bf16.mxu0 0
        %2147 = vmatmul.mubr.bf16.gmra.mrb[0].mxu0 %v2044
        %v2148 = vpop.f32.mrb[0].mxu0
        %v2149 = vadd.f32 0.0, %v2148
        %v2150 = vpop.f32.mrb[0].mxu0
        %v2151 = vpop.f32.mrb[0].mxu0
        %v2152 = vadd.f32 0.0, %v2151
        %v2153 = vpop.f32.mrb[0].mxu0
        %2154 = vmatprep.mubr.bf16.mxu0 0
        %2155 = vmatmul.mubr.bf16.gmra.mrb[0].mxu0 %v2045
        %v2156 = vpop.f32.mrb[0].mxu0
        %v2157 = vadd.f32 0.0, %v2156
        %v2158 = vpop.f32.mrb[0].mxu0
        %v2159 = vpop.f32.mrb[0].mxu0
        %v2160 = vadd.f32 0.0, %v2159
        %v2161 = vpop.f32.mrb[0].mxu0
        %2162 = vdwg.mxu0
        %v2163 = vadd.f32 %v1889, %v2133
        %v2164 = vadd.f32 %v1890, %v2136
        %v2165 = vadd.f32 %v1891, %v2141
        %v2166 = vadd.f32 %v1892, %v2144
        %v2167 = vadd.f32 %v1893, %v2149
        %v2168 = vadd.f32 %v1894, %v2152
        %v2169 = vadd.f32 %v1895, %v2157
        %v2170 = vadd.f32 %v1896, %v2160
        %s2171 = scalar_lea.vmem %s6, 448
        %v2172 = vld [vmem:[%s2171] sm:$0xf]
        %v2173 = vld [vmem:[%s2171 + $0x4] sm:$0xf]
        %v2174 = vld [vmem:[%s2171 + $0x8] sm:$0xf]
        %v2175 = vld [vmem:[%s2171 + $0xc] sm:$0xf]
        %v2176 = vld [vmem:[%s2171 + $0x10] sm:$0xf]
        %v2177 = vld [vmem:[%s2171 + $0x14] sm:$0xf]
        %v2178 = vld [vmem:[%s2171 + $0x18] sm:$0xf]
        %v2179 = vld [vmem:[%s2171 + $0x1c] sm:$0xf]
        %v2180 = vld [vmem:[%s2171 + $0x20] sm:$0xf]
        %v2181 = vld [vmem:[%s2171 + $0x24] sm:$0xf]
        %v2182 = vld [vmem:[%s2171 + $0x28] sm:$0xf]
        %v2183 = vld [vmem:[%s2171 + $0x2c] sm:$0xf]
        %v2184 = vld [vmem:[%s2171 + $0x30] sm:$0xf]
        %v2185 = vld [vmem:[%s2171 + $0x34] sm:$0xf]
        %v2186 = vld [vmem:[%s2171 + $0x38] sm:$0xf]
        %v2187 = vld [vmem:[%s2171 + $0x3c] sm:$0xf]
        %v2196 = vunpack.c.l.b16 %v723
        %v2197 = vunpack.c.l.b16 %v724
        %v2198 = vunpack.c.l.b16 %v725
        %v2199 = vunpack.c.l.b16 %v726
        %v2200 = vunpack.c.l.b16 %v727
        %v2201 = vunpack.c.l.b16 %v728
        %v2202 = vunpack.c.l.b16 %v729
        %v2203 = vunpack.c.l.b16 %v730
        %v2204 = vpack.c.b16 %v2197, %v2196
        %v2205 = vpack.c.b16 %v2199, %v2198
        %v2206 = vpack.c.b16 %v2201, %v2200
        %v2207 = vpack.c.b16 %v2203, %v2202
        %v2228 = vunpack.c.l.b16 %v2172
        %v2229 = vunpack.c.l.b16 %v2173
        %v2230 = vunpack.c.l.b16 %v2174
        %v2231 = vunpack.c.l.b16 %v2175
        %v2232 = vunpack.c.l.b16 %v2176
        %v2233 = vunpack.c.l.b16 %v2177
        %v2234 = vunpack.c.l.b16 %v2178
        %v2235 = vunpack.c.l.b16 %v2179
        %v2236 = vunpack.c.l.b16 %v2180
        %v2237 = vunpack.c.l.b16 %v2181
        %v2238 = vunpack.c.l.b16 %v2182
        %v2239 = vunpack.c.l.b16 %v2183
        %v2240 = vunpack.c.l.b16 %v2184
        %v2241 = vunpack.c.l.b16 %v2185
        %v2242 = vunpack.c.l.b16 %v2186
        %v2243 = vunpack.c.l.b16 %v2187
        %v2244 = vpack.c.b16 %v2229, %v2228
        %v2245 = vpack.c.b16 %v2231, %v2230
        %v2246 = vpack.c.b16 %v2233, %v2232
        %v2247 = vpack.c.b16 %v2235, %v2234
        %v2248 = vpack.c.b16 %v2237, %v2236
        %v2249 = vpack.c.b16 %v2239, %v2238
        %v2250 = vpack.c.b16 %v2241, %v2240
        %v2251 = vpack.c.b16 %v2243, %v2242
        %2260 = vmatprep.subr.bf16.mxu0 0
        %2261 = vmatpush1.bf16.msra.mxu0 %v2244
        %2262 = vmatprep.subr.bf16.mxu0 0
        %2263 = vmatpush1.bf16.msra.mxu0 %v2245
        %2264 = vmatprep.subr.bf16.mxu0 0
        %2265 = vmatpush1.bf16.msra.mxu0 %v2246
        %2266 = vmatprep.subr.bf16.mxu0 0
        %2267 = vmatpush1.bf16.msra.mxu0 %v2247
        %2268 = vmatprep.subr.bf16.mxu0 0
        %2269 = vmatpush1.bf16.msra.mxu0 %v2248
        %2270 = vmatprep.subr.bf16.mxu0 0
        %2271 = vmatpush1.bf16.msra.mxu0 %v2249
        %2272 = vmatprep.subr.bf16.mxu0 0
        %2273 = vmatpush1.bf16.msra.mxu0 %v2250
        %2274 = vmatprep.subr.bf16.mxu0 0
        %2275 = vmatpush1.bf16.msra.mxu0 %v2251
        %2276 = vmatprep.subr.bf16.mxu0 0
        %2277 = vmatpush1.bf16.msra.mxu0 0
        %2278 = vmatprep.subr.bf16.mxu0 0
        %2279 = vmatpush1.bf16.msra.mxu0 0
        %2280 = vmatprep.subr.bf16.mxu0 0
        %2281 = vmatpush1.bf16.msra.mxu0 0
        %2282 = vmatprep.subr.bf16.mxu0 0
        %2283 = vmatpush1.bf16.msra.mxu0 0
        %2284 = vmatprep.subr.bf16.mxu0 0
        %2285 = vmatpush1.bf16.msra.mxu0 0
        %2286 = vmatprep.subr.bf16.mxu0 0
        %2287 = vmatpush1.bf16.msra.mxu0 0
        %2288 = vmatprep.subr.bf16.mxu0 0
        %2289 = vmatpush1.bf16.msra.mxu0 0
        %2290 = vmatprep.subr.bf16.mxu0 0
        %2291 = vmatpush1.bf16.msra.mxu0 0
        %2292 = vmatprep.mubr.bf16.mxu0 0
        %2293 = vmatmul.mubr.bf16.gmra.mrb[0].mxu0 %v2204
        %v2294 = vpop.f32.mrb[0].mxu0
        %v2295 = vadd.f32 0.0, %v2294
        %v2296 = vpop.f32.mrb[0].mxu0
        %v2297 = vpop.f32.mrb[0].mxu0
        %v2298 = vadd.f32 0.0, %v2297
        %v2299 = vpop.f32.mrb[0].mxu0
        %2300 = vmatprep.mubr.bf16.mxu0 0
        %2301 = vmatmul.mubr.bf16.gmra.mrb[0].mxu0 %v2205
        %v2302 = vpop.f32.mrb[0].mxu0
        %v2303 = vadd.f32 0.0, %v2302
        %v2304 = vpop.f32.mrb[0].mxu0
        %v2305 = vpop.f32.mrb[0].mxu0
        %v2306 = vadd.f32 0.0, %v2305
        %v2307 = vpop.f32.mrb[0].mxu0
        %2308 = vmatprep.mubr.bf16.mxu0 0
        %2309 = vmatmul.mubr.bf16.gmra.mrb[0].mxu0 %v2206
        %v2310 = vpop.f32.mrb[0].mxu0
        %v2311 = vadd.f32 0.0, %v2310
        %v2312 = vpop.f32.mrb[0].mxu0
        %v2313 = vpop.f32.mrb[0].mxu0
        %v2314 = vadd.f32 0.0, %v2313
        %v2315 = vpop.f32.mrb[0].mxu0
        %2316 = vmatprep.mubr.bf16.mxu0 0
        %2317 = vmatmul.mubr.bf16.gmra.mrb[0].mxu0 %v2207
        %v2318 = vpop.f32.mrb[0].mxu0
        %v2319 = vadd.f32 0.0, %v2318
        %v2320 = vpop.f32.mrb[0].mxu0
        %v2321 = vpop.f32.mrb[0].mxu0
        %v2322 = vadd.f32 0.0, %v2321
        %v2323 = vpop.f32.mrb[0].mxu0
        %2324 = vdwg.mxu0
        %v2325 = vadd.f32 %v2163, %v2295
        %v2326 = vadd.f32 %v2164, %v2298
        %v2327 = vadd.f32 %v2165, %v2303
        %v2328 = vadd.f32 %v2166, %v2306
        %v2329 = vadd.f32 %v2167, %v2311
        %v2330 = vadd.f32 %v2168, %v2314
        %v2331 = vadd.f32 %v2169, %v2319
        %v2332 = vadd.f32 %v2170, %v2322
        %s2333 = scalar_lea.vmem %s6, 512
        %v2334 = vld [vmem:[%s2333] sm:$0xf]
        %v2335 = vld [vmem:[%s2333 + $0x4] sm:$0xf]
        %v2336 = vld [vmem:[%s2333 + $0x8] sm:$0xf]
        %v2337 = vld [vmem:[%s2333 + $0xc] sm:$0xf]
        %v2338 = vld [vmem:[%s2333 + $0x10] sm:$0xf]
        %v2339 = vld [vmem:[%s2333 + $0x14] sm:$0xf]
        %v2340 = vld [vmem:[%s2333 + $0x18] sm:$0xf]
        %v2341 = vld [vmem:[%s2333 + $0x1c] sm:$0xf]
        %v2342 = vld [vmem:[%s2333 + $0x20] sm:$0xf]
        %v2343 = vld [vmem:[%s2333 + $0x24] sm:$0xf]
        %v2344 = vld [vmem:[%s2333 + $0x28] sm:$0xf]
        %v2345 = vld [vmem:[%s2333 + $0x2c] sm:$0xf]
        %v2346 = vld [vmem:[%s2333 + $0x30] sm:$0xf]
        %v2347 = vld [vmem:[%s2333 + $0x34] sm:$0xf]
        %v2348 = vld [vmem:[%s2333 + $0x38] sm:$0xf]
        %v2349 = vld [vmem:[%s2333 + $0x3c] sm:$0xf]
        %v2350 = vunpack.c.l.b16 %v1910
        %v2351 = vunpack.c.l.b16 %v1924
        %v2352 = vunpack.c.l.b16 %v1938
        %v2353 = vunpack.c.l.b16 %v1952
        %v2354 = vunpack.c.l.b16 %v1966
        %v2355 = vunpack.c.l.b16 %v1980
        %v2356 = vunpack.c.l.b16 %v1994
        %v2357 = vunpack.c.l.b16 %v2008
        %v2358 = vpack.c.b16 %v2351, %v2350
        %v2359 = vpack.c.b16 %v2353, %v2352
        %v2360 = vpack.c.b16 %v2355, %v2354
        %v2361 = vpack.c.b16 %v2357, %v2356
        %v2382 = vunpack.c.l.b16 %v2334
        %v2383 = vunpack.c.l.b16 %v2335
        %v2384 = vunpack.c.l.b16 %v2336
        %v2385 = vunpack.c.l.b16 %v2337
        %v2386 = vunpack.c.l.b16 %v2338
        %v2387 = vunpack.c.l.b16 %v2339
        %v2388 = vunpack.c.l.b16 %v2340
        %v2389 = vunpack.c.l.b16 %v2341
        %v2390 = vunpack.c.l.b16 %v2342
        %v2391 = vunpack.c.l.b16 %v2343
        %v2392 = vunpack.c.l.b16 %v2344
        %v2393 = vunpack.c.l.b16 %v2345
        %v2394 = vunpack.c.l.b16 %v2346
        %v2395 = vunpack.c.l.b16 %v2347
        %v2396 = vunpack.c.l.b16 %v2348
        %v2397 = vunpack.c.l.b16 %v2349
        %v2398 = vpack.c.b16 %v2383, %v2382
        %v2399 = vpack.c.b16 %v2385, %v2384
        %v2400 = vpack.c.b16 %v2387, %v2386
        %v2401 = vpack.c.b16 %v2389, %v2388
        %v2402 = vpack.c.b16 %v2391, %v2390
        %v2403 = vpack.c.b16 %v2393, %v2392
        %v2404 = vpack.c.b16 %v2395, %v2394
        %v2405 = vpack.c.b16 %v2397, %v2396
        %2414 = vmatprep.subr.bf16.mxu0 0
        %2415 = vmatpush1.bf16.msra.mxu0 %v2398
        %2416 = vmatprep.subr.bf16.mxu0 0
        %2417 = vmatpush1.bf16.msra.mxu0 %v2399
        %2418 = vmatprep.subr.bf16.mxu0 0
        %2419 = vmatpush1.bf16.msra.mxu0 %v2400
        %2420 = vmatprep.subr.bf16.mxu0 0
        %2421 = vmatpush1.bf16.msra.mxu0 %v2401
        %2422 = vmatprep.subr.bf16.mxu0 0
        %2423 = vmatpush1.bf16.msra.mxu0 %v2402
        %2424 = vmatprep.subr.bf16.mxu0 0
        %2425 = vmatpush1.bf16.msra.mxu0 %v2403
        %2426 = vmatprep.subr.bf16.mxu0 0
        %2427 = vmatpush1.bf16.msra.mxu0 %v2404
        %2428 = vmatprep.subr.bf16.mxu0 0
        %2429 = vmatpush1.bf16.msra.mxu0 %v2405
        %2430 = vmatprep.subr.bf16.mxu0 0
        %2431 = vmatpush1.bf16.msra.mxu0 0
        %2432 = vmatprep.subr.bf16.mxu0 0
        %2433 = vmatpush1.bf16.msra.mxu0 0
        %2434 = vmatprep.subr.bf16.mxu0 0
        %2435 = vmatpush1.bf16.msra.mxu0 0
        %2436 = vmatprep.subr.bf16.mxu0 0
        %2437 = vmatpush1.bf16.msra.mxu0 0
        %2438 = vmatprep.subr.bf16.mxu0 0
        %2439 = vmatpush1.bf16.msra.mxu0 0
        %2440 = vmatprep.subr.bf16.mxu0 0
        %2441 = vmatpush1.bf16.msra.mxu0 0
        %2442 = vmatprep.subr.bf16.mxu0 0
        %2443 = vmatpush1.bf16.msra.mxu0 0
        %2444 = vmatprep.subr.bf16.mxu0 0
        %2445 = vmatpush1.bf16.msra.mxu0 0
        %2446 = vmatprep.mubr.bf16.mxu0 0
        %2447 = vmatmul.mubr.bf16.gmra.mrb[0].mxu0 %v2358
        %v2448 = vpop.f32.mrb[0].mxu0
        %v2449 = vadd.f32 0.0, %v2448
        %v2450 = vpop.f32.mrb[0].mxu0
        %v2451 = vpop.f32.mrb[0].mxu0
        %v2452 = vadd.f32 0.0, %v2451
        %v2453 = vpop.f32.mrb[0].mxu0
        %2454 = vmatprep.mubr.bf16.mxu0 0
        %2455 = vmatmul.mubr.bf16.gmra.mrb[0].mxu0 %v2359
        %v2456 = vpop.f32.mrb[0].mxu0
        %v2457 = vadd.f32 0.0, %v2456
        %v2458 = vpop.f32.mrb[0].mxu0
        %v2459 = vpop.f32.mrb[0].mxu0
        %v2460 = vadd.f32 0.0, %v2459
        %v2461 = vpop.f32.mrb[0].mxu0
        %2462 = vmatprep.mubr.bf16.mxu0 0
        %2463 = vmatmul.mubr.bf16.gmra.mrb[0].mxu0 %v2360
        %v2464 = vpop.f32.mrb[0].mxu0
        %v2465 = vadd.f32 0.0, %v2464
        %v2466 = vpop.f32.mrb[0].mxu0
        %v2467 = vpop.f32.mrb[0].mxu0
        %v2468 = vadd.f32 0.0, %v2467
        %v2469 = vpop.f32.mrb[0].mxu0
        %2470 = vmatprep.mubr.bf16.mxu0 0
        %2471 = vmatmul.mubr.bf16.gmra.mrb[0].mxu0 %v2361
        %v2472 = vpop.f32.mrb[0].mxu0
        %v2473 = vadd.f32 0.0, %v2472
        %v2474 = vpop.f32.mrb[0].mxu0
        %v2475 = vpop.f32.mrb[0].mxu0
        %v2476 = vadd.f32 0.0, %v2475
        %v2477 = vpop.f32.mrb[0].mxu0
        %2478 = vdwg.mxu0
        %v2479 = vadd.f32 %v2325, %v2449
        %v2480 = vadd.f32 %v2326, %v2452
        %v2481 = vadd.f32 %v2327, %v2457
        %v2482 = vadd.f32 %v2328, %v2460
        %v2483 = vadd.f32 %v2329, %v2465
        %v2484 = vadd.f32 %v2330, %v2468
        %v2485 = vadd.f32 %v2331, %v2473
        %v2486 = vadd.f32 %v2332, %v2476
        %v2487 = vld [vmem:[%s7] sm:$0x1]
        %v2489 = vlaneseq
        %v2490 = vshrl.u32 %v2489, 7
        %v2491 = vsub.s32 0, %v2490
        %v2492 = vrot.slane %v2487, %v2491
        %v2494 = vadd.f32 %v2479, %v2492
        %v2495 = vadd.f32 %v2480, %v2492
        %v2496 = vadd.f32 %v2481, %v2492
        %v2497 = vadd.f32 %v2482, %v2492
        %v2498 = vadd.f32 %v2483, %v2492
        %v2499 = vadd.f32 %v2484, %v2492
        %v2500 = vadd.f32 %v2485, %v2492
        %v2501 = vadd.f32 %v2486, %v2492
        %2502 = vst [vmem:[%s500] sm:$0xff] %v2494
        %2503 = vst [vmem:[%s500 + $0x8] sm:$0xff] %v2495
        %2504 = vst [vmem:[%s500 + $0x10] sm:$0xff] %v2496
        %2505 = vst [vmem:[%s500 + $0x18] sm:$0xff] %v2497
        %2506 = vst [vmem:[%s500 + $0x20] sm:$0xff] %v2498
        %2507 = vst [vmem:[%s500 + $0x28] sm:$0xff] %v2499
        %2508 = vst [vmem:[%s500 + $0x30] sm:$0xff] %v2500
        %2509 = vst [vmem:[%s500 + $0x38] sm:$0xff] %v2501
        %s2510 = sand.u32 %s262, 1
        %s2511 = scalar_lea.sflag [#allocation5], %s2510
        %s2512 = sand.u32 %s262, 1
        %s2513 = smul.addr %s2512, 64
        %s2514 = scalar_lea.vmem [#allocation4], %s2513
        // Predicated region
        $region53: #{downsample_forward.1} parent=51 // pred_check
          %p2515 = pneg %p272
        $region54: #{downsample_forward.1} parent=51 // pred_check_branch
          %2517 = sbr.rel (%p2515) target = $region56
        $region55: #{downsample_forward.1} parent=51 // pred_region
          %s2518 = smul.u32 8, %s27
          %s2520 = ssub.s32 1024, 1024
          %2521 = vsyncadd %s2511, %s2520
          %s2522 = smul.addr %s26, 8
          %s2523 = sadd.s32 %s2518, %s2522
          %s2524 = smul.addr %s2523, 128
          %s2525 = scalar_lea.hbm %s8, %s2524
          %s2526 = sshll.u32 %s2514, 4
          %s2527 = int_to_ptr.vmem [resolvable:$true] %s2526
          %2532 = dma.vmem_to_hbm [thread:$0]  %s2527, 1024, %s2525, %s2511, 128, 128, 8
        $region56: #{downsample_forward.1} parent=51 // pred_fallthru
          _
      $region52: #{downsample_forward.1} parent=5 // pred_fallthru
        _
      %p2533 = scmp.le.s32.totalorder 2, %s17
      // Predicated region
      $region57: #{downsample_forward.1} parent=5 // pred_check
        %p2534 = pneg %p2533
      $region58: #{downsample_forward.1} parent=5 // pred_check_branch
        %2536 = sbr.rel (%p2534) target = $region60
      $region59: #{downsample_forward.1} parent=5 // pred_region
        %s2537 = ssub.s32 %s17, 2
        // Predicated region
        $region61: #{downsample_forward.1} parent=59 // pred_check
          %p2538 = pneg %p278
        $region62: #{downsample_forward.1} parent=59 // pred_check_branch
          %2540 = sbr.rel (%p2538) target = $region64
        $region63: #{downsample_forward.1} parent=59 // pred_region
          %s2541 = sand.u32 %s263, 1
          %s2542 = scalar_lea.sflag [#allocation5], %s2541
          %s2543 = sand.u32 %s263, 1
          %s2544 = smul.addr %s2543, 64
          %s2545 = scalar_lea.vmem [#allocation4], %s2544
          %2546 = dma.done %s2542, 1024
        $region64: #{downsample_forward.1} parent=59 // pred_fallthru
          _
      $region60: #{downsample_forward.1} parent=5 // pred_fallthru
        _
    $region6: #{downsample_forward.1} parent=1 // loop_footer
      %s21 = sadd.s32 1, %s17
    $region7: #{downsample_forward.1} parent=1 // loop_footer_branch
      %16 = sbr.rel target = $region3
    $region8: #{downsample_forward.1} parent=1 // loop_exit
      _
    %2547 = vsyncpa [#allocation5], 1
    %s2548 = scalar_lea.sflag [#allocation5], 1
    %2549 = vsyncpa %s2548, 1

</llo_original>
